<compile_context>
chip_gen: v6e
topology: v6e:2x2x1
jax: 0.10.0
libtpu: 0.0.40
codegen_flags: <defaults>
</compile_context>

<pallas_src>
import functools
import math

import jax
import jax.numpy as jnp
import numpy as np
from jax.experimental import pallas as pl
from jax.experimental.pallas import tpu as pltpu


# ---------------- fused kernel ----------------

def _fused_mha_kernel(xq_ref, xk_ref, xv_ref, wq_ref, wk_ref, wv_ref, wd_ref,
                      b_ref, o_ref, c_ref, *, num_heads, depth):
    d_model = num_heads * depth
    seq = xq_ref.shape[1]
    nt = (((1,), (1,)), ((), ()))  # contract last dim of both operands (A @ B.T)

    # --- projections on the MXU (bf16 operands, f32 accumulation) ---
    # qT[m, s] = sum_i wq[m, i] * xq[s, i]   (1/sqrt(depth) already folded in)
    qT = jax.lax.dot_general(wq_ref[...], xq_ref[0], nt,
                             preferred_element_type=jnp.float32)   # (d_model, S)
    k = jax.lax.dot_general(xk_ref[0], wk_ref[...], nt,
                            preferred_element_type=jnp.float32)    # (S, d_model)
    v = jax.lax.dot_general(xv_ref[0], wv_ref[...], nt,
                            preferred_element_type=jnp.float32)    # (S, d_model)

    # --- per-position attention over `depth`, contracting over heads (VPU) ---
    for s in range(seq):
        q_s = qT[:, s:s + 1]            # (d_model, 1)  column of q for this position
        k_s = k[s:s + 1, :]             # (1, d_model)
        v_s = v[s:s + 1, :]             # (1, d_model)

        # logits[d, e] = sum_h q[s, h*depth + d] * k[s, h*depth + e]
        logits = q_s[0:depth, :] * k_s[:, 0:depth]
        for h in range(1, num_heads):
            lo = h * depth
            hi = lo + depth
            logits = logits + q_s[lo:hi, :] * k_s[:, lo:hi]

        # f32 softmax over e (lane axis)
        mmax = jnp.max(logits, axis=-1, keepdims=True)
        p = jnp.exp(logits - mmax)
        denom = jnp.sum(p, axis=-1, keepdims=True)
        p = p * pl.reciprocal(denom, approx=True)

        # att[s, d, h] = sum_e p[d, e] * v[s, h*depth + e]
        # Written straight into the concat scratch: concat[d, s*num_heads + h].
        for h in range(num_heads):
            lo = h * depth
            hi = lo + depth
            col = jnp.sum(p * v_s[:, lo:hi], axis=-1, keepdims=True)   # (depth, 1)
            c = s * num_heads + h
            c_ref[:, c:c + 1] = col

    # --- concat + output projection (+ bias) ---
    # c_ref holds transpose(att, (1, 0, 2)) flattened as (depth, S*num_heads),
    # which IS the PyTorch transpose(1,2).view(B, -1, d_model) result when
    # S == depth (the reshape below is then a no-op).
    # TODO(synk): for S != depth this relies on Mosaic's general in-kernel
    # reshape support for the odd PyTorch view() interleaving.
    concat = c_ref[...].reshape(seq, d_model)
    out = jax.lax.dot_general(concat.astype(jnp.bfloat16), wd_ref[...], nt,
                              preferred_element_type=jnp.float32) + b_ref[...]
    o_ref[0] = out.astype(o_ref.dtype)


# ---------------- wrapper ----------------

def prepare_params(params):
    """One-time parameter prep: fold 1/sqrt(depth) into the Q weight and cast
    matmul weights to bf16.  Weights stay in PyTorch (out, in) layout."""
    d_model = params["wq"].shape[0]
    num_heads = params["num_heads"]
    depth = d_model // num_heads
    scale = 1.0 / math.sqrt(depth)
    return {
        "num_heads": num_heads,
        "wq": (params["wq"] * scale).astype(jnp.bfloat16),
        "wk": params["wk"].astype(jnp.bfloat16),
        "wv": params["wv"].astype(jnp.bfloat16),
        "wd": params["wd"].astype(jnp.bfloat16),
        "bd": params["bd"].reshape(1, d_model).astype(jnp.float32),
    }


@functools.partial(jax.jit, static_argnums=(0,))
def _mha_forward(num_heads, wq, wk, wv, wd, bd, query, key, value):
    d_model, d_input = wq.shape
    depth = d_model // num_heads
    B, S, _ = query.shape

    kernel = functools.partial(_fused_mha_kernel,
                               num_heads=num_heads, depth=depth)
    act_spec = pl.BlockSpec((1, S, d_input), lambda b: (b, 0, 0))
    w_in_spec = pl.BlockSpec((d_model, d_input), lambda b: (0, 0))

    return pl.pallas_call(
        kernel,
        out_shape=jax.ShapeDtypeStruct((B, S, d_model), jnp.float32),
        grid=(B,),
        in_specs=[act_spec, act_spec, act_spec,
                  w_in_spec, w_in_spec, w_in_spec,
                  pl.BlockSpec((d_model, d_model), lambda b: (0, 0)),
                  pl.BlockSpec((1, d_model), lambda b: (0, 0))],
        out_specs=pl.BlockSpec((1, S, d_model), lambda b: (b, 0, 0)),
        scratch_shapes=[pltpu.VMEM((depth, S * num_heads), jnp.float32)],
        compiler_params=pltpu.CompilerParams(
            dimension_semantics=("parallel",),
            vmem_limit_bytes=32 * 1024 * 1024),
    )(query.astype(jnp.bfloat16), key.astype(jnp.bfloat16),
      value.astype(jnp.bfloat16), wq, wk, wv, wd, bd)


def multi_head_attention(prepped, query, key, value):
    return _mha_forward(prepped["num_heads"], prepped["wq"], prepped["wk"],
                        prepped["wv"], prepped["wd"], prepped["bd"],
                        query, key, value)


# ---------------- pure-JAX reference (mirrors PyTorch exactly, f32) ----------------

def reference(params, query, key, value):
    d_model = params["wq"].shape[0]
    H = params["num_heads"]
    depth = d_model // H
    B = query.shape[0]

    def lin(x, w):
        return jnp.einsum('bsn,mn->bsm', x, w)

    def split(x):
        Bx, Sx, _ = x.shape
        return x.reshape(Bx, Sx, H, depth).swapaxes(-1, -2)

    q = split(lin(query, params["wq"]))
    k = split(lin(key, params["wk"]))
    v = split(lin(value, params["wv"]))
    logits = jnp.matmul(q, jnp.swapaxes(k, -1, -2)) / np.sqrt(depth)
    p = jax.nn.softmax(logits, axis=-1)
    sa = jnp.matmul(p, v)
    concat = jnp.swapaxes(sa, 1, 2).reshape(B, -1, d_model)
    return jnp.einsum('bsn,mn->bsm', concat, params["wd"]) + params["bd"]


if __name__ == "__main__":
    d_model, num_heads, d_input = 32, 4, 32
    B, S = 2, 8   # S == depth (= d_model // num_heads = 8)

    key0 = jax.random.PRNGKey(0)
    ks = jax.random.split(key0, 8)
    lim_in = 1.0 / math.sqrt(d_input)
    lim_dm = 1.0 / math.sqrt(d_model)
    params = {
        "num_heads": num_heads,
        "wq": jax.random.uniform(ks[0], (d_model, d_input), jnp.float32, -lim_in, lim_in),
        "wk": jax.random.uniform(ks[1], (d_model, d_input), jnp.float32, -lim_in, lim_in),
        "wv": jax.random.uniform(ks[2], (d_model, d_input), jnp.float32, -lim_in, lim_in),
        "wd": jax.random.uniform(ks[3], (d_model, d_model), jnp.float32, -lim_dm, lim_dm),
        "bd": jax.random.uniform(ks[4], (d_model,), jnp.float32, -lim_dm, lim_dm),
    }

    query = jax.random.normal(ks[5], (B, S, d_input), jnp.float32)
    key_x = jax.random.normal(ks[6], (B, S, d_input), jnp.float32)
    value = jax.random.normal(ks[7], (B, S, d_input), jnp.float32)

    prepped = prepare_params(params)
    out = multi_head_attention(prepped, query, key_x, value)
    out = jax.block_until_ready(out)

    ref = reference(params, query, key_x, value)
    assert out.shape == (B, S, d_model), out.shape
    np.testing.assert_allclose(np.asarray(out), np.asarray(ref),
                               rtol=2e-2, atol=2e-2)
    print("KERNEL_OK")
</pallas_src>

<mosaic_0001>
module attributes {stable_mosaic.version = 11 : i64} {
  func.func @_fused_mha_kernel(%arg0: i32, %arg1: memref<1x8x32xbf16, #tpu.memory_space<vmem>>, %arg2: memref<1x8x32xbf16, #tpu.memory_space<vmem>>, %arg3: memref<1x8x32xbf16, #tpu.memory_space<vmem>>, %arg4: memref<32x32xbf16, #tpu.memory_space<vmem>>, %arg5: memref<32x32xbf16, #tpu.memory_space<vmem>>, %arg6: memref<32x32xbf16, #tpu.memory_space<vmem>>, %arg7: memref<32x32xbf16, #tpu.memory_space<vmem>>, %arg8: memref<1x32xf32, #tpu.memory_space<vmem>>, %arg9: memref<1x8x32xf32, #tpu.memory_space<vmem>>, %arg10: memref<8x32xf32, #tpu.memory_space<vmem>>) attributes {dimension_semantics = [#tpu.dimension_semantics<parallel>], iteration_bounds = array<i64: 2>, scalar_prefetch = 0 : i64, scratch_operands = 1 : i64, tpu.core_type = #tpu.core_type<tc>, window_params = [{transform_indices = @transform_0, window_bounds = array<i64: 1, 8, 32>}, {transform_indices = @transform_1, window_bounds = array<i64: 1, 8, 32>}, {transform_indices = @transform_2, window_bounds = array<i64: 1, 8, 32>}, {pipeline_mode = #tpu.pipeline_mode<synchronous>, transform_indices = @transform_3, window_bounds = array<i64: 32, 32>}, {pipeline_mode = #tpu.pipeline_mode<synchronous>, transform_indices = @transform_4, window_bounds = array<i64: 32, 32>}, {pipeline_mode = #tpu.pipeline_mode<synchronous>, transform_indices = @transform_5, window_bounds = array<i64: 32, 32>}, {pipeline_mode = #tpu.pipeline_mode<synchronous>, transform_indices = @transform_6, window_bounds = array<i64: 32, 32>}, {pipeline_mode = #tpu.pipeline_mode<synchronous>, transform_indices = @transform_7, window_bounds = array<i64: 1, 32>}, {transform_indices = @transform_8, window_bounds = array<i64: 1, 8, 32>}]} {
    %c0 = arith.constant 0 : index
    %c0_0 = arith.constant 0 : index
    %0 = vector.load %arg4[%c0, %c0_0] : memref<32x32xbf16, #tpu.memory_space<vmem>>, vector<32x32xbf16>
    %c0_1 = arith.constant 0 : index
    %c0_2 = arith.constant 0 : index
    %c0_3 = arith.constant 0 : index
    %1 = vector.load %arg1[%c0_1, %c0_2, %c0_3] : memref<1x8x32xbf16, #tpu.memory_space<vmem>>, vector<1x8x32xbf16>
    %2 = vector.shape_cast %1 : vector<1x8x32xbf16> to vector<8x32xbf16>
    %cst = arith.constant dense<0.000000e+00> : vector<32x8xf32>
    %3 = tpu.matmul %0, %2, %cst {dimension_numbers = #tpu.dot_dimension_numbers<[1], [1], [0], [0], [0, 0, 1, 0], [], []>} : vector<32x32xbf16>, vector<8x32xbf16>, vector<32x8xf32> -> vector<32x8xf32>
    %c0_4 = arith.constant 0 : index
    %c0_5 = arith.constant 0 : index
    %c0_6 = arith.constant 0 : index
    %4 = vector.load %arg2[%c0_4, %c0_5, %c0_6] : memref<1x8x32xbf16, #tpu.memory_space<vmem>>, vector<1x8x32xbf16>
    %5 = vector.shape_cast %4 : vector<1x8x32xbf16> to vector<8x32xbf16>
    %c0_7 = arith.constant 0 : index
    %c0_8 = arith.constant 0 : index
    %6 = vector.load %arg5[%c0_7, %c0_8] : memref<32x32xbf16, #tpu.memory_space<vmem>>, vector<32x32xbf16>
    %cst_9 = arith.constant dense<0.000000e+00> : vector<8x32xf32>
    %7 = tpu.matmul %5, %6, %cst_9 {dimension_numbers = #tpu.dot_dimension_numbers<[1], [1], [0], [0], [0, 0, 1, 0], [], []>} : vector<8x32xbf16>, vector<32x32xbf16>, vector<8x32xf32> -> vector<8x32xf32>
    %c0_10 = arith.constant 0 : index
    %c0_11 = arith.constant 0 : index
    %c0_12 = arith.constant 0 : index
    %8 = vector.load %arg3[%c0_10, %c0_11, %c0_12] : memref<1x8x32xbf16, #tpu.memory_space<vmem>>, vector<1x8x32xbf16>
    %9 = vector.shape_cast %8 : vector<1x8x32xbf16> to vector<8x32xbf16>
    %c0_13 = arith.constant 0 : index
    %c0_14 = arith.constant 0 : index
    %10 = vector.load %arg6[%c0_13, %c0_14] : memref<32x32xbf16, #tpu.memory_space<vmem>>, vector<32x32xbf16>
    %cst_15 = arith.constant dense<0.000000e+00> : vector<8x32xf32>
    %11 = tpu.matmul %9, %10, %cst_15 {dimension_numbers = #tpu.dot_dimension_numbers<[1], [1], [0], [0], [0, 0, 1, 0], [], []>} : vector<8x32xbf16>, vector<32x32xbf16>, vector<8x32xf32> -> vector<8x32xf32>
    %12 = vector.extract_strided_slice %3 {offsets = [0, 0], sizes = [32, 1], strides = [1, 1]} : vector<32x8xf32> to vector<32x1xf32>
    %13 = vector.extract_strided_slice %7 {offsets = [0, 0], sizes = [1, 32], strides = [1, 1]} : vector<8x32xf32> to vector<1x32xf32>
    %14 = vector.extract_strided_slice %11 {offsets = [0, 0], sizes = [1, 32], strides = [1, 1]} : vector<8x32xf32> to vector<1x32xf32>
    %15 = vector.extract_strided_slice %12 {offsets = [0, 0], sizes = [8, 1], strides = [1, 1]} : vector<32x1xf32> to vector<8x1xf32>
    %16 = vector.extract_strided_slice %13 {offsets = [0, 0], sizes = [1, 8], strides = [1, 1]} : vector<1x32xf32> to vector<1x8xf32>
    %17 = vector.broadcast %15 : vector<8x1xf32> to vector<8x8xf32>
    %18 = vector.broadcast %16 : vector<1x8xf32> to vector<8x8xf32>
    %19 = arith.mulf %17, %18 : vector<8x8xf32>
    %20 = vector.extract_strided_slice %12 {offsets = [8, 0], sizes = [8, 1], strides = [1, 1]} : vector<32x1xf32> to vector<8x1xf32>
    %21 = vector.extract_strided_slice %13 {offsets = [0, 8], sizes = [1, 8], strides = [1, 1]} : vector<1x32xf32> to vector<1x8xf32>
    %22 = vector.broadcast %20 : vector<8x1xf32> to vector<8x8xf32>
    %23 = vector.broadcast %21 : vector<1x8xf32> to vector<8x8xf32>
    %24 = arith.mulf %22, %23 : vector<8x8xf32>
    %25 = arith.addf %19, %24 : vector<8x8xf32>
    %26 = vector.extract_strided_slice %12 {offsets = [16, 0], sizes = [8, 1], strides = [1, 1]} : vector<32x1xf32> to vector<8x1xf32>
    %27 = vector.extract_strided_slice %13 {offsets = [0, 16], sizes = [1, 8], strides = [1, 1]} : vector<1x32xf32> to vector<1x8xf32>
    %28 = vector.broadcast %26 : vector<8x1xf32> to vector<8x8xf32>
    %29 = vector.broadcast %27 : vector<1x8xf32> to vector<8x8xf32>
    %30 = arith.mulf %28, %29 : vector<8x8xf32>
    %31 = arith.addf %25, %30 : vector<8x8xf32>
    %32 = vector.extract_strided_slice %12 {offsets = [24, 0], sizes = [8, 1], strides = [1, 1]} : vector<32x1xf32> to vector<8x1xf32>
    %33 = vector.extract_strided_slice %13 {offsets = [0, 24], sizes = [1, 8], strides = [1, 1]} : vector<1x32xf32> to vector<1x8xf32>
    %34 = vector.broadcast %32 : vector<8x1xf32> to vector<8x8xf32>
    %35 = vector.broadcast %33 : vector<1x8xf32> to vector<8x8xf32>
    %36 = arith.mulf %34, %35 : vector<8x8xf32>
    %37 = arith.addf %31, %36 : vector<8x8xf32>
    %cst_16 = arith.constant dense<0xFF800000> : vector<8xf32>
    %38 = vector.multi_reduction <maximumf>, %37, %cst_16 [1] : vector<8x8xf32> to vector<8xf32>
    %39 = vector.shape_cast %38 : vector<8xf32> to vector<8x1xf32>
    %40 = vector.broadcast %39 : vector<8x1xf32> to vector<8x8xf32>
    %41 = arith.subf %37, %40 : vector<8x8xf32>
    %42 = math.exp %41 : vector<8x8xf32>
    %cst_17 = arith.constant dense<0.000000e+00> : vector<8xf32>
    %43 = vector.multi_reduction <add>, %42, %cst_17 [1] : vector<8x8xf32> to vector<8xf32>
    %44 = vector.shape_cast %43 : vector<8xf32> to vector<8x1xf32>
    %45 = tpu.reciprocal %44 {approx = true} : vector<8x1xf32> -> vector<8x1xf32>
    %46 = vector.broadcast %45 : vector<8x1xf32> to vector<8x8xf32>
    %47 = arith.mulf %42, %46 : vector<8x8xf32>
    %48 = vector.extract_strided_slice %14 {offsets = [0, 0], sizes = [1, 8], strides = [1, 1]} : vector<1x32xf32> to vector<1x8xf32>
    %49 = vector.broadcast %48 : vector<1x8xf32> to vector<8x8xf32>
    %50 = arith.mulf %47, %49 : vector<8x8xf32>
    %cst_18 = arith.constant dense<0.000000e+00> : vector<8xf32>
    %51 = vector.multi_reduction <add>, %50, %cst_18 [1] : vector<8x8xf32> to vector<8xf32>
    %52 = vector.shape_cast %51 : vector<8xf32> to vector<8x1xf32>
    %c0_19 = arith.constant 0 : index
    %c0_20 = arith.constant 0 : index
    %53 = vector.load %arg10[%c0_19, %c0_20] : memref<8x32xf32, #tpu.memory_space<vmem>>, vector<8x1xf32>
    tpu.vector_store %arg10[%c0_19, %c0_20], %52 {strides = array<i32>} : memref<8x32xf32, #tpu.memory_space<vmem>>, vector<8x1xf32>,
    %54 = vector.extract_strided_slice %14 {offsets = [0, 8], sizes = [1, 8], strides = [1, 1]} : vector<1x32xf32> to vector<1x8xf32>
    %55 = vector.broadcast %54 : vector<1x8xf32> to vector<8x8xf32>
    %56 = arith.mulf %47, %55 : vector<8x8xf32>
    %cst_21 = arith.constant dense<0.000000e+00> : vector<8xf32>
    %57 = vector.multi_reduction <add>, %56, %cst_21 [1] : vector<8x8xf32> to vector<8xf32>
    %58 = vector.shape_cast %57 : vector<8xf32> to vector<8x1xf32>
    %c0_22 = arith.constant 0 : index
    %c1 = arith.constant 1 : index
    %59 = vector.load %arg10[%c0_22, %c1] : memref<8x32xf32, #tpu.memory_space<vmem>>, vector<8x1xf32>
    tpu.vector_store %arg10[%c0_22, %c1], %58 {strides = array<i32>} : memref<8x32xf32, #tpu.memory_space<vmem>>, vector<8x1xf32>,
    %60 = vector.extract_strided_slice %14 {offsets = [0, 16], sizes = [1, 8], strides = [1, 1]} : vector<1x32xf32> to vector<1x8xf32>
    %61 = vector.broadcast %60 : vector<1x8xf32> to vector<8x8xf32>
    %62 = arith.mulf %47, %61 : vector<8x8xf32>
    %cst_23 = arith.constant dense<0.000000e+00> : vector<8xf32>
    %63 = vector.multi_reduction <add>, %62, %cst_23 [1] : vector<8x8xf32> to vector<8xf32>
    %64 = vector.shape_cast %63 : vector<8xf32> to vector<8x1xf32>
    %c0_24 = arith.constant 0 : index
    %c2 = arith.constant 2 : index
    %65 = vector.load %arg10[%c0_24, %c2] : memref<8x32xf32, #tpu.memory_space<vmem>>, vector<8x1xf32>
    tpu.vector_store %arg10[%c0_24, %c2], %64 {strides = array<i32>} : memref<8x32xf32, #tpu.memory_space<vmem>>, vector<8x1xf32>,
    %66 = vector.extract_strided_slice %14 {offsets = [0, 24], sizes = [1, 8], strides = [1, 1]} : vector<1x32xf32> to vector<1x8xf32>
    %67 = vector.broadcast %66 : vector<1x8xf32> to vector<8x8xf32>
    %68 = arith.mulf %47, %67 : vector<8x8xf32>
    %cst_25 = arith.constant dense<0.000000e+00> : vector<8xf32>
    %69 = vector.multi_reduction <add>, %68, %cst_25 [1] : vector<8x8xf32> to vector<8xf32>
    %70 = vector.shape_cast %69 : vector<8xf32> to vector<8x1xf32>
    %c0_26 = arith.constant 0 : index
    %c3 = arith.constant 3 : index
    %71 = vector.load %arg10[%c0_26, %c3] : memref<8x32xf32, #tpu.memory_space<vmem>>, vector<8x1xf32>
    tpu.vector_store %arg10[%c0_26, %c3], %70 {strides = array<i32>} : memref<8x32xf32, #tpu.memory_space<vmem>>, vector<8x1xf32>,
    %72 = vector.extract_strided_slice %3 {offsets = [0, 1], sizes = [32, 1], strides = [1, 1]} : vector<32x8xf32> to vector<32x1xf32>
    %73 = vector.extract_strided_slice %7 {offsets = [1, 0], sizes = [1, 32], strides = [1, 1]} : vector<8x32xf32> to vector<1x32xf32>
    %74 = vector.extract_strided_slice %11 {offsets = [1, 0], sizes = [1, 32], strides = [1, 1]} : vector<8x32xf32> to vector<1x32xf32>
    %75 = vector.extract_strided_slice %72 {offsets = [0, 0], sizes = [8, 1], strides = [1, 1]} : vector<32x1xf32> to vector<8x1xf32>
    %76 = vector.extract_strided_slice %73 {offsets = [0, 0], sizes = [1, 8], strides = [1, 1]} : vector<1x32xf32> to vector<1x8xf32>
    %77 = vector.broadcast %75 : vector<8x1xf32> to vector<8x8xf32>
    %78 = vector.broadcast %76 : vector<1x8xf32> to vector<8x8xf32>
    %79 = arith.mulf %77, %78 : vector<8x8xf32>
    %80 = vector.extract_strided_slice %72 {offsets = [8, 0], sizes = [8, 1], strides = [1, 1]} : vector<32x1xf32> to vector<8x1xf32>
    %81 = vector.extract_strided_slice %73 {offsets = [0, 8], sizes = [1, 8], strides = [1, 1]} : vector<1x32xf32> to vector<1x8xf32>
    %82 = vector.broadcast %80 : vector<8x1xf32> to vector<8x8xf32>
    %83 = vector.broadcast %81 : vector<1x8xf32> to vector<8x8xf32>
    %84 = arith.mulf %82, %83 : vector<8x8xf32>
    %85 = arith.addf %79, %84 : vector<8x8xf32>
    %86 = vector.extract_strided_slice %72 {offsets = [16, 0], sizes = [8, 1], strides = [1, 1]} : vector<32x1xf32> to vector<8x1xf32>
    %87 = vector.extract_strided_slice %73 {offsets = [0, 16], sizes = [1, 8], strides = [1, 1]} : vector<1x32xf32> to vector<1x8xf32>
    %88 = vector.broadcast %86 : vector<8x1xf32> to vector<8x8xf32>
    %89 = vector.broadcast %87 : vector<1x8xf32> to vector<8x8xf32>
    %90 = arith.mulf %88, %89 : vector<8x8xf32>
    %91 = arith.addf %85, %90 : vector<8x8xf32>
    %92 = vector.extract_strided_slice %72 {offsets = [24, 0], sizes = [8, 1], strides = [1, 1]} : vector<32x1xf32> to vector<8x1xf32>
    %93 = vector.extract_strided_slice %73 {offsets = [0, 24], sizes = [1, 8], strides = [1, 1]} : vector<1x32xf32> to vector<1x8xf32>
    %94 = vector.broadcast %92 : vector<8x1xf32> to vector<8x8xf32>
    %95 = vector.broadcast %93 : vector<1x8xf32> to vector<8x8xf32>
    %96 = arith.mulf %94, %95 : vector<8x8xf32>
    %97 = arith.addf %91, %96 : vector<8x8xf32>
    %cst_27 = arith.constant dense<0xFF800000> : vector<8xf32>
    %98 = vector.multi_reduction <maximumf>, %97, %cst_27 [1] : vector<8x8xf32> to vector<8xf32>
    %99 = vector.shape_cast %98 : vector<8xf32> to vector<8x1xf32>
    %100 = vector.broadcast %99 : vector<8x1xf32> to vector<8x8xf32>
    %101 = arith.subf %97, %100 : vector<8x8xf32>
    %102 = math.exp %101 : vector<8x8xf32>
    %cst_28 = arith.constant dense<0.000000e+00> : vector<8xf32>
    %103 = vector.multi_reduction <add>, %102, %cst_28 [1] : vector<8x8xf32> to vector<8xf32>
    %104 = vector.shape_cast %103 : vector<8xf32> to vector<8x1xf32>
    %105 = tpu.reciprocal %104 {approx = true} : vector<8x1xf32> -> vector<8x1xf32>
    %106 = vector.broadcast %105 : vector<8x1xf32> to vector<8x8xf32>
    %107 = arith.mulf %102, %106 : vector<8x8xf32>
    %108 = vector.extract_strided_slice %74 {offsets = [0, 0], sizes = [1, 8], strides = [1, 1]} : vector<1x32xf32> to vector<1x8xf32>
    %109 = vector.broadcast %108 : vector<1x8xf32> to vector<8x8xf32>
    %110 = arith.mulf %107, %109 : vector<8x8xf32>
    %cst_29 = arith.constant dense<0.000000e+00> : vector<8xf32>
    %111 = vector.multi_reduction <add>, %110, %cst_29 [1] : vector<8x8xf32> to vector<8xf32>
    %112 = vector.shape_cast %111 : vector<8xf32> to vector<8x1xf32>
    %c0_30 = arith.constant 0 : index
    %c4 = arith.constant 4 : index
    %113 = vector.load %arg10[%c0_30, %c4] : memref<8x32xf32, #tpu.memory_space<vmem>>, vector<8x1xf32>
    tpu.vector_store %arg10[%c0_30, %c4], %112 {strides = array<i32>} : memref<8x32xf32, #tpu.memory_space<vmem>>, vector<8x1xf32>,
    %114 = vector.extract_strided_slice %74 {offsets = [0, 8], sizes = [1, 8], strides = [1, 1]} : vector<1x32xf32> to vector<1x8xf32>
    %115 = vector.broadcast %114 : vector<1x8xf32> to vector<8x8xf32>
    %116 = arith.mulf %107, %115 : vector<8x8xf32>
    %cst_31 = arith.constant dense<0.000000e+00> : vector<8xf32>
    %117 = vector.multi_reduction <add>, %116, %cst_31 [1] : vector<8x8xf32> to vector<8xf32>
    %118 = vector.shape_cast %117 : vector<8xf32> to vector<8x1xf32>
    %c0_32 = arith.constant 0 : index
    %c5 = arith.constant 5 : index
    %119 = vector.load %arg10[%c0_32, %c5] : memref<8x32xf32, #tpu.memory_space<vmem>>, vector<8x1xf32>
    tpu.vector_store %arg10[%c0_32, %c5], %118 {strides = array<i32>} : memref<8x32xf32, #tpu.memory_space<vmem>>, vector<8x1xf32>,
    %120 = vector.extract_strided_slice %74 {offsets = [0, 16], sizes = [1, 8], strides = [1, 1]} : vector<1x32xf32> to vector<1x8xf32>
    %121 = vector.broadcast %120 : vector<1x8xf32> to vector<8x8xf32>
    %122 = arith.mulf %107, %121 : vector<8x8xf32>
    %cst_33 = arith.constant dense<0.000000e+00> : vector<8xf32>
    %123 = vector.multi_reduction <add>, %122, %cst_33 [1] : vector<8x8xf32> to vector<8xf32>
    %124 = vector.shape_cast %123 : vector<8xf32> to vector<8x1xf32>
    %c0_34 = arith.constant 0 : index
    %c6 = arith.constant 6 : index
    %125 = vector.load %arg10[%c0_34, %c6] : memref<8x32xf32, #tpu.memory_space<vmem>>, vector<8x1xf32>
    tpu.vector_store %arg10[%c0_34, %c6], %124 {strides = array<i32>} : memref<8x32xf32, #tpu.memory_space<vmem>>, vector<8x1xf32>,
    %126 = vector.extract_strided_slice %74 {offsets = [0, 24], sizes = [1, 8], strides = [1, 1]} : vector<1x32xf32> to vector<1x8xf32>
    %127 = vector.broadcast %126 : vector<1x8xf32> to vector<8x8xf32>
    %128 = arith.mulf %107, %127 : vector<8x8xf32>
    %cst_35 = arith.constant dense<0.000000e+00> : vector<8xf32>
    %129 = vector.multi_reduction <add>, %128, %cst_35 [1] : vector<8x8xf32> to vector<8xf32>
    %130 = vector.shape_cast %129 : vector<8xf32> to vector<8x1xf32>
    %c0_36 = arith.constant 0 : index
    %c7 = arith.constant 7 : index
    %131 = vector.load %arg10[%c0_36, %c7] : memref<8x32xf32, #tpu.memory_space<vmem>>, vector<8x1xf32>
    tpu.vector_store %arg10[%c0_36, %c7], %130 {strides = array<i32>} : memref<8x32xf32, #tpu.memory_space<vmem>>, vector<8x1xf32>,
    %132 = vector.extract_strided_slice %3 {offsets = [0, 2], sizes = [32, 1], strides = [1, 1]} : vector<32x8xf32> to vector<32x1xf32>
    %133 = vector.extract_strided_slice %7 {offsets = [2, 0], sizes = [1, 32], strides = [1, 1]} : vector<8x32xf32> to vector<1x32xf32>
    %134 = vector.extract_strided_slice %11 {offsets = [2, 0], sizes = [1, 32], strides = [1, 1]} : vector<8x32xf32> to vector<1x32xf32>
    %135 = vector.extract_strided_slice %132 {offsets = [0, 0], sizes = [8, 1], strides = [1, 1]} : vector<32x1xf32> to vector<8x1xf32>
    %136 = vector.extract_strided_slice %133 {offsets = [0, 0], sizes = [1, 8], strides = [1, 1]} : vector<1x32xf32> to vector<1x8xf32>
    %137 = vector.broadcast %135 : vector<8x1xf32> to vector<8x8xf32>
    %138 = vector.broadcast %136 : vector<1x8xf32> to vector<8x8xf32>
    %139 = arith.mulf %137, %138 : vector<8x8xf32>
    %140 = vector.extract_strided_slice %132 {offsets = [8, 0], sizes = [8, 1], strides = [1, 1]} : vector<32x1xf32> to vector<8x1xf32>
    %141 = vector.extract_strided_slice %133 {offsets = [0, 8], sizes = [1, 8], strides = [1, 1]} : vector<1x32xf32> to vector<1x8xf32>
    %142 = vector.broadcast %140 : vector<8x1xf32> to vector<8x8xf32>
    %143 = vector.broadcast %141 : vector<1x8xf32> to vector<8x8xf32>
    %144 = arith.mulf %142, %143 : vector<8x8xf32>
    %145 = arith.addf %139, %144 : vector<8x8xf32>
    %146 = vector.extract_strided_slice %132 {offsets = [16, 0], sizes = [8, 1], strides = [1, 1]} : vector<32x1xf32> to vector<8x1xf32>
    %147 = vector.extract_strided_slice %133 {offsets = [0, 16], sizes = [1, 8], strides = [1, 1]} : vector<1x32xf32> to vector<1x8xf32>
    %148 = vector.broadcast %146 : vector<8x1xf32> to vector<8x8xf32>
    %149 = vector.broadcast %147 : vector<1x8xf32> to vector<8x8xf32>
    %150 = arith.mulf %148, %149 : vector<8x8xf32>
    %151 = arith.addf %145, %150 : vector<8x8xf32>
    %152 = vector.extract_strided_slice %132 {offsets = [24, 0], sizes = [8, 1], strides = [1, 1]} : vector<32x1xf32> to vector<8x1xf32>
    %153 = vector.extract_strided_slice %133 {offsets = [0, 24], sizes = [1, 8], strides = [1, 1]} : vector<1x32xf32> to vector<1x8xf32>
    %154 = vector.broadcast %152 : vector<8x1xf32> to vector<8x8xf32>
    %155 = vector.broadcast %153 : vector<1x8xf32> to vector<8x8xf32>
    %156 = arith.mulf %154, %155 : vector<8x8xf32>
    %157 = arith.addf %151, %156 : vector<8x8xf32>
    %cst_37 = arith.constant dense<0xFF800000> : vector<8xf32>
    %158 = vector.multi_reduction <maximumf>, %157, %cst_37 [1] : vector<8x8xf32> to vector<8xf32>
    %159 = vector.shape_cast %158 : vector<8xf32> to vector<8x1xf32>
    %160 = vector.broadcast %159 : vector<8x1xf32> to vector<8x8xf32>
    %161 = arith.subf %157, %160 : vector<8x8xf32>
    %162 = math.exp %161 : vector<8x8xf32>
    %cst_38 = arith.constant dense<0.000000e+00> : vector<8xf32>
    %163 = vector.multi_reduction <add>, %162, %cst_38 [1] : vector<8x8xf32> to vector<8xf32>
    %164 = vector.shape_cast %163 : vector<8xf32> to vector<8x1xf32>
    %165 = tpu.reciprocal %164 {approx = true} : vector<8x1xf32> -> vector<8x1xf32>
    %166 = vector.broadcast %165 : vector<8x1xf32> to vector<8x8xf32>
    %167 = arith.mulf %162, %166 : vector<8x8xf32>
    %168 = vector.extract_strided_slice %134 {offsets = [0, 0], sizes = [1, 8], strides = [1, 1]} : vector<1x32xf32> to vector<1x8xf32>
    %169 = vector.broadcast %168 : vector<1x8xf32> to vector<8x8xf32>
    %170 = arith.mulf %167, %169 : vector<8x8xf32>
    %cst_39 = arith.constant dense<0.000000e+00> : vector<8xf32>
    %171 = vector.multi_reduction <add>, %170, %cst_39 [1] : vector<8x8xf32> to vector<8xf32>
    %172 = vector.shape_cast %171 : vector<8xf32> to vector<8x1xf32>
    %c0_40 = arith.constant 0 : index
    %c8 = arith.constant 8 : index
    %173 = vector.load %arg10[%c0_40, %c8] : memref<8x32xf32, #tpu.memory_space<vmem>>, vector<8x1xf32>
    tpu.vector_store %arg10[%c0_40, %c8], %172 {strides = array<i32>} : memref<8x32xf32, #tpu.memory_space<vmem>>, vector<8x1xf32>,
    %174 = vector.extract_strided_slice %134 {offsets = [0, 8], sizes = [1, 8], strides = [1, 1]} : vector<1x32xf32> to vector<1x8xf32>
    %175 = vector.broadcast %174 : vector<1x8xf32> to vector<8x8xf32>
    %176 = arith.mulf %167, %175 : vector<8x8xf32>
    %cst_41 = arith.constant dense<0.000000e+00> : vector<8xf32>
    %177 = vector.multi_reduction <add>, %176, %cst_41 [1] : vector<8x8xf32> to vector<8xf32>
    %178 = vector.shape_cast %177 : vector<8xf32> to vector<8x1xf32>
    %c0_42 = arith.constant 0 : index
    %c9 = arith.constant 9 : index
    %179 = vector.load %arg10[%c0_42, %c9] : memref<8x32xf32, #tpu.memory_space<vmem>>, vector<8x1xf32>
    tpu.vector_store %arg10[%c0_42, %c9], %178 {strides = array<i32>} : memref<8x32xf32, #tpu.memory_space<vmem>>, vector<8x1xf32>,
    %180 = vector.extract_strided_slice %134 {offsets = [0, 16], sizes = [1, 8], strides = [1, 1]} : vector<1x32xf32> to vector<1x8xf32>
    %181 = vector.broadcast %180 : vector<1x8xf32> to vector<8x8xf32>
    %182 = arith.mulf %167, %181 : vector<8x8xf32>
    %cst_43 = arith.constant dense<0.000000e+00> : vector<8xf32>
    %183 = vector.multi_reduction <add>, %182, %cst_43 [1] : vector<8x8xf32> to vector<8xf32>
    %184 = vector.shape_cast %183 : vector<8xf32> to vector<8x1xf32>
    %c0_44 = arith.constant 0 : index
    %c10 = arith.constant 10 : index
    %185 = vector.load %arg10[%c0_44, %c10] : memref<8x32xf32, #tpu.memory_space<vmem>>, vector<8x1xf32>
    tpu.vector_store %arg10[%c0_44, %c10], %184 {strides = array<i32>} : memref<8x32xf32, #tpu.memory_space<vmem>>, vector<8x1xf32>,
    %186 = vector.extract_strided_slice %134 {offsets = [0, 24], sizes = [1, 8], strides = [1, 1]} : vector<1x32xf32> to vector<1x8xf32>
    %187 = vector.broadcast %186 : vector<1x8xf32> to vector<8x8xf32>
    %188 = arith.mulf %167, %187 : vector<8x8xf32>
    %cst_45 = arith.constant dense<0.000000e+00> : vector<8xf32>
    %189 = vector.multi_reduction <add>, %188, %cst_45 [1] : vector<8x8xf32> to vector<8xf32>
    %190 = vector.shape_cast %189 : vector<8xf32> to vector<8x1xf32>
    %c0_46 = arith.constant 0 : index
    %c11 = arith.constant 11 : index
    %191 = vector.load %arg10[%c0_46, %c11] : memref<8x32xf32, #tpu.memory_space<vmem>>, vector<8x1xf32>
    tpu.vector_store %arg10[%c0_46, %c11], %190 {strides = array<i32>} : memref<8x32xf32, #tpu.memory_space<vmem>>, vector<8x1xf32>,
    %192 = vector.extract_strided_slice %3 {offsets = [0, 3], sizes = [32, 1], strides = [1, 1]} : vector<32x8xf32> to vector<32x1xf32>
    %193 = vector.extract_strided_slice %7 {offsets = [3, 0], sizes = [1, 32], strides = [1, 1]} : vector<8x32xf32> to vector<1x32xf32>
    %194 = vector.extract_strided_slice %11 {offsets = [3, 0], sizes = [1, 32], strides = [1, 1]} : vector<8x32xf32> to vector<1x32xf32>
    %195 = vector.extract_strided_slice %192 {offsets = [0, 0], sizes = [8, 1], strides = [1, 1]} : vector<32x1xf32> to vector<8x1xf32>
    %196 = vector.extract_strided_slice %193 {offsets = [0, 0], sizes = [1, 8], strides = [1, 1]} : vector<1x32xf32> to vector<1x8xf32>
    %197 = vector.broadcast %195 : vector<8x1xf32> to vector<8x8xf32>
    %198 = vector.broadcast %196 : vector<1x8xf32> to vector<8x8xf32>
    %199 = arith.mulf %197, %198 : vector<8x8xf32>
    %200 = vector.extract_strided_slice %192 {offsets = [8, 0], sizes = [8, 1], strides = [1, 1]} : vector<32x1xf32> to vector<8x1xf32>
    %201 = vector.extract_strided_slice %193 {offsets = [0, 8], sizes = [1, 8], strides = [1, 1]} : vector<1x32xf32> to vector<1x8xf32>
    %202 = vector.broadcast %200 : vector<8x1xf32> to vector<8x8xf32>
    %203 = vector.broadcast %201 : vector<1x8xf32> to vector<8x8xf32>
    %204 = arith.mulf %202, %203 : vector<8x8xf32>
    %205 = arith.addf %199, %204 : vector<8x8xf32>
    %206 = vector.extract_strided_slice %192 {offsets = [16, 0], sizes = [8, 1], strides = [1, 1]} : vector<32x1xf32> to vector<8x1xf32>
    %207 = vector.extract_strided_slice %193 {offsets = [0, 16], sizes = [1, 8], strides = [1, 1]} : vector<1x32xf32> to vector<1x8xf32>
    %208 = vector.broadcast %206 : vector<8x1xf32> to vector<8x8xf32>
    %209 = vector.broadcast %207 : vector<1x8xf32> to vector<8x8xf32>
    %210 = arith.mulf %208, %209 : vector<8x8xf32>
    %211 = arith.addf %205, %210 : vector<8x8xf32>
    %212 = vector.extract_strided_slice %192 {offsets = [24, 0], sizes = [8, 1], strides = [1, 1]} : vector<32x1xf32> to vector<8x1xf32>
    %213 = vector.extract_strided_slice %193 {offsets = [0, 24], sizes = [1, 8], strides = [1, 1]} : vector<1x32xf32> to vector<1x8xf32>
    %214 = vector.broadcast %212 : vector<8x1xf32> to vector<8x8xf32>
    %215 = vector.broadcast %213 : vector<1x8xf32> to vector<8x8xf32>
    %216 = arith.mulf %214, %215 : vector<8x8xf32>
    %217 = arith.addf %211, %216 : vector<8x8xf32>
    %cst_47 = arith.constant dense<0xFF800000> : vector<8xf32>
    %218 = vector.multi_reduction <maximumf>, %217, %cst_47 [1] : vector<8x8xf32> to vector<8xf32>
    %219 = vector.shape_cast %218 : vector<8xf32> to vector<8x1xf32>
    %220 = vector.broadcast %219 : vector<8x1xf32> to vector<8x8xf32>
    %221 = arith.subf %217, %220 : vector<8x8xf32>
    %222 = math.exp %221 : vector<8x8xf32>
    %cst_48 = arith.constant dense<0.000000e+00> : vector<8xf32>
    %223 = vector.multi_reduction <add>, %222, %cst_48 [1] : vector<8x8xf32> to vector<8xf32>
    %224 = vector.shape_cast %223 : vector<8xf32> to vector<8x1xf32>
    %225 = tpu.reciprocal %224 {approx = true} : vector<8x1xf32> -> vector<8x1xf32>
    %226 = vector.broadcast %225 : vector<8x1xf32> to vector<8x8xf32>
    %227 = arith.mulf %222, %226 : vector<8x8xf32>
    %228 = vector.extract_strided_slice %194 {offsets = [0, 0], sizes = [1, 8], strides = [1, 1]} : vector<1x32xf32> to vector<1x8xf32>
    %229 = vector.broadcast %228 : vector<1x8xf32> to vector<8x8xf32>
    %230 = arith.mulf %227, %229 : vector<8x8xf32>
    %cst_49 = arith.constant dense<0.000000e+00> : vector<8xf32>
    %231 = vector.multi_reduction <add>, %230, %cst_49 [1] : vector<8x8xf32> to vector<8xf32>
    %232 = vector.shape_cast %231 : vector<8xf32> to vector<8x1xf32>
    %c0_50 = arith.constant 0 : index
    %c12 = arith.constant 12 : index
    %233 = vector.load %arg10[%c0_50, %c12] : memref<8x32xf32, #tpu.memory_space<vmem>>, vector<8x1xf32>
    tpu.vector_store %arg10[%c0_50, %c12], %232 {strides = array<i32>} : memref<8x32xf32, #tpu.memory_space<vmem>>, vector<8x1xf32>,
    %234 = vector.extract_strided_slice %194 {offsets = [0, 8], sizes = [1, 8], strides = [1, 1]} : vector<1x32xf32> to vector<1x8xf32>
    %235 = vector.broadcast %234 : vector<1x8xf32> to vector<8x8xf32>
    %236 = arith.mulf %227, %235 : vector<8x8xf32>
    %cst_51 = arith.constant dense<0.000000e+00> : vector<8xf32>
    %237 = vector.multi_reduction <add>, %236, %cst_51 [1] : vector<8x8xf32> to vector<8xf32>
    %238 = vector.shape_cast %237 : vector<8xf32> to vector<8x1xf32>
    %c0_52 = arith.constant 0 : index
    %c13 = arith.constant 13 : index
    %239 = vector.load %arg10[%c0_52, %c13] : memref<8x32xf32, #tpu.memory_space<vmem>>, vector<8x1xf32>
    tpu.vector_store %arg10[%c0_52, %c13], %238 {strides = array<i32>} : memref<8x32xf32, #tpu.memory_space<vmem>>, vector<8x1xf32>,
    %240 = vector.extract_strided_slice %194 {offsets = [0, 16], sizes = [1, 8], strides = [1, 1]} : vector<1x32xf32> to vector<1x8xf32>
    %241 = vector.broadcast %240 : vector<1x8xf32> to vector<8x8xf32>
    %242 = arith.mulf %227, %241 : vector<8x8xf32>
    %cst_53 = arith.constant dense<0.000000e+00> : vector<8xf32>
    %243 = vector.multi_reduction <add>, %242, %cst_53 [1] : vector<8x8xf32> to vector<8xf32>
    %244 = vector.shape_cast %243 : vector<8xf32> to vector<8x1xf32>
    %c0_54 = arith.constant 0 : index
    %c14 = arith.constant 14 : index
    %245 = vector.load %arg10[%c0_54, %c14] : memref<8x32xf32, #tpu.memory_space<vmem>>, vector<8x1xf32>
    tpu.vector_store %arg10[%c0_54, %c14], %244 {strides = array<i32>} : memref<8x32xf32, #tpu.memory_space<vmem>>, vector<8x1xf32>,
    %246 = vector.extract_strided_slice %194 {offsets = [0, 24], sizes = [1, 8], strides = [1, 1]} : vector<1x32xf32> to vector<1x8xf32>
    %247 = vector.broadcast %246 : vector<1x8xf32> to vector<8x8xf32>
    %248 = arith.mulf %227, %247 : vector<8x8xf32>
    %cst_55 = arith.constant dense<0.000000e+00> : vector<8xf32>
    %249 = vector.multi_reduction <add>, %248, %cst_55 [1] : vector<8x8xf32> to vector<8xf32>
    %250 = vector.shape_cast %249 : vector<8xf32> to vector<8x1xf32>
    %c0_56 = arith.constant 0 : index
    %c15 = arith.constant 15 : index
    %251 = vector.load %arg10[%c0_56, %c15] : memref<8x32xf32, #tpu.memory_space<vmem>>, vector<8x1xf32>
    tpu.vector_store %arg10[%c0_56, %c15], %250 {strides = array<i32>} : memref<8x32xf32, #tpu.memory_space<vmem>>, vector<8x1xf32>,
    %252 = vector.extract_strided_slice %3 {offsets = [0, 4], sizes = [32, 1], strides = [1, 1]} : vector<32x8xf32> to vector<32x1xf32>
    %253 = vector.extract_strided_slice %7 {offsets = [4, 0], sizes = [1, 32], strides = [1, 1]} : vector<8x32xf32> to vector<1x32xf32>
    %254 = vector.extract_strided_slice %11 {offsets = [4, 0], sizes = [1, 32], strides = [1, 1]} : vector<8x32xf32> to vector<1x32xf32>
    %255 = vector.extract_strided_slice %252 {offsets = [0, 0], sizes = [8, 1], strides = [1, 1]} : vector<32x1xf32> to vector<8x1xf32>
    %256 = vector.extract_strided_slice %253 {offsets = [0, 0], sizes = [1, 8], strides = [1, 1]} : vector<1x32xf32> to vector<1x8xf32>
    %257 = vector.broadcast %255 : vector<8x1xf32> to vector<8x8xf32>
    %258 = vector.broadcast %256 : vector<1x8xf32> to vector<8x8xf32>
    %259 = arith.mulf %257, %258 : vector<8x8xf32>
    %260 = vector.extract_strided_slice %252 {offsets = [8, 0], sizes = [8, 1], strides = [1, 1]} : vector<32x1xf32> to vector<8x1xf32>
    %261 = vector.extract_strided_slice %253 {offsets = [0, 8], sizes = [1, 8], strides = [1, 1]} : vector<1x32xf32> to vector<1x8xf32>
    %262 = vector.broadcast %260 : vector<8x1xf32> to vector<8x8xf32>
    %263 = vector.broadcast %261 : vector<1x8xf32> to vector<8x8xf32>
    %264 = arith.mulf %262, %263 : vector<8x8xf32>
    %265 = arith.addf %259, %264 : vector<8x8xf32>
    %266 = vector.extract_strided_slice %252 {offsets = [16, 0], sizes = [8, 1], strides = [1, 1]} : vector<32x1xf32> to vector<8x1xf32>
    %267 = vector.extract_strided_slice %253 {offsets = [0, 16], sizes = [1, 8], strides = [1, 1]} : vector<1x32xf32> to vector<1x8xf32>
    %268 = vector.broadcast %266 : vector<8x1xf32> to vector<8x8xf32>
    %269 = vector.broadcast %267 : vector<1x8xf32> to vector<8x8xf32>
    %270 = arith.mulf %268, %269 : vector<8x8xf32>
    %271 = arith.addf %265, %270 : vector<8x8xf32>
    %272 = vector.extract_strided_slice %252 {offsets = [24, 0], sizes = [8, 1], strides = [1, 1]} : vector<32x1xf32> to vector<8x1xf32>
    %273 = vector.extract_strided_slice %253 {offsets = [0, 24], sizes = [1, 8], strides = [1, 1]} : vector<1x32xf32> to vector<1x8xf32>
    %274 = vector.broadcast %272 : vector<8x1xf32> to vector<8x8xf32>
    %275 = vector.broadcast %273 : vector<1x8xf32> to vector<8x8xf32>
    %276 = arith.mulf %274, %275 : vector<8x8xf32>
    %277 = arith.addf %271, %276 : vector<8x8xf32>
    %cst_57 = arith.constant dense<0xFF800000> : vector<8xf32>
    %278 = vector.multi_reduction <maximumf>, %277, %cst_57 [1] : vector<8x8xf32> to vector<8xf32>
    %279 = vector.shape_cast %278 : vector<8xf32> to vector<8x1xf32>
    %280 = vector.broadcast %279 : vector<8x1xf32> to vector<8x8xf32>
    %281 = arith.subf %277, %280 : vector<8x8xf32>
    %282 = math.exp %281 : vector<8x8xf32>
    %cst_58 = arith.constant dense<0.000000e+00> : vector<8xf32>
    %283 = vector.multi_reduction <add>, %282, %cst_58 [1] : vector<8x8xf32> to vector<8xf32>
    %284 = vector.shape_cast %283 : vector<8xf32> to vector<8x1xf32>
    %285 = tpu.reciprocal %284 {approx = true} : vector<8x1xf32> -> vector<8x1xf32>
    %286 = vector.broadcast %285 : vector<8x1xf32> to vector<8x8xf32>
    %287 = arith.mulf %282, %286 : vector<8x8xf32>
    %288 = vector.extract_strided_slice %254 {offsets = [0, 0], sizes = [1, 8], strides = [1, 1]} : vector<1x32xf32> to vector<1x8xf32>
    %289 = vector.broadcast %288 : vector<1x8xf32> to vector<8x8xf32>
    %290 = arith.mulf %287, %289 : vector<8x8xf32>
    %cst_59 = arith.constant dense<0.000000e+00> : vector<8xf32>
    %291 = vector.multi_reduction <add>, %290, %cst_59 [1] : vector<8x8xf32> to vector<8xf32>
    %292 = vector.shape_cast %291 : vector<8xf32> to vector<8x1xf32>
    %c0_60 = arith.constant 0 : index
    %c16 = arith.constant 16 : index
    %293 = vector.load %arg10[%c0_60, %c16] : memref<8x32xf32, #tpu.memory_space<vmem>>, vector<8x1xf32>
    tpu.vector_store %arg10[%c0_60, %c16], %292 {strides = array<i32>} : memref<8x32xf32, #tpu.memory_space<vmem>>, vector<8x1xf32>,
    %294 = vector.extract_strided_slice %254 {offsets = [0, 8], sizes = [1, 8], strides = [1, 1]} : vector<1x32xf32> to vector<1x8xf32>
    %295 = vector.broadcast %294 : vector<1x8xf32> to vector<8x8xf32>
    %296 = arith.mulf %287, %295 : vector<8x8xf32>
    %cst_61 = arith.constant dense<0.000000e+00> : vector<8xf32>
    %297 = vector.multi_reduction <add>, %296, %cst_61 [1] : vector<8x8xf32> to vector<8xf32>
    %298 = vector.shape_cast %297 : vector<8xf32> to vector<8x1xf32>
    %c0_62 = arith.constant 0 : index
    %c17 = arith.constant 17 : index
    %299 = vector.load %arg10[%c0_62, %c17] : memref<8x32xf32, #tpu.memory_space<vmem>>, vector<8x1xf32>
    tpu.vector_store %arg10[%c0_62, %c17], %298 {strides = array<i32>} : memref<8x32xf32, #tpu.memory_space<vmem>>, vector<8x1xf32>,
    %300 = vector.extract_strided_slice %254 {offsets = [0, 16], sizes = [1, 8], strides = [1, 1]} : vector<1x32xf32> to vector<1x8xf32>
    %301 = vector.broadcast %300 : vector<1x8xf32> to vector<8x8xf32>
    %302 = arith.mulf %287, %301 : vector<8x8xf32>
    %cst_63 = arith.constant dense<0.000000e+00> : vector<8xf32>
    %303 = vector.multi_reduction <add>, %302, %cst_63 [1] : vector<8x8xf32> to vector<8xf32>
    %304 = vector.shape_cast %303 : vector<8xf32> to vector<8x1xf32>
    %c0_64 = arith.constant 0 : index
    %c18 = arith.constant 18 : index
    %305 = vector.load %arg10[%c0_64, %c18] : memref<8x32xf32, #tpu.memory_space<vmem>>, vector<8x1xf32>
    tpu.vector_store %arg10[%c0_64, %c18], %304 {strides = array<i32>} : memref<8x32xf32, #tpu.memory_space<vmem>>, vector<8x1xf32>,
    %306 = vector.extract_strided_slice %254 {offsets = [0, 24], sizes = [1, 8], strides = [1, 1]} : vector<1x32xf32> to vector<1x8xf32>
    %307 = vector.broadcast %306 : vector<1x8xf32> to vector<8x8xf32>
    %308 = arith.mulf %287, %307 : vector<8x8xf32>
    %cst_65 = arith.constant dense<0.000000e+00> : vector<8xf32>
    %309 = vector.multi_reduction <add>, %308, %cst_65 [1] : vector<8x8xf32> to vector<8xf32>
    %310 = vector.shape_cast %309 : vector<8xf32> to vector<8x1xf32>
    %c0_66 = arith.constant 0 : index
    %c19 = arith.constant 19 : index
    %311 = vector.load %arg10[%c0_66, %c19] : memref<8x32xf32, #tpu.memory_space<vmem>>, vector<8x1xf32>
    tpu.vector_store %arg10[%c0_66, %c19], %310 {strides = array<i32>} : memref<8x32xf32, #tpu.memory_space<vmem>>, vector<8x1xf32>,
    %312 = vector.extract_strided_slice %3 {offsets = [0, 5], sizes = [32, 1], strides = [1, 1]} : vector<32x8xf32> to vector<32x1xf32>
    %313 = vector.extract_strided_slice %7 {offsets = [5, 0], sizes = [1, 32], strides = [1, 1]} : vector<8x32xf32> to vector<1x32xf32>
    %314 = vector.extract_strided_slice %11 {offsets = [5, 0], sizes = [1, 32], strides = [1, 1]} : vector<8x32xf32> to vector<1x32xf32>
    %315 = vector.extract_strided_slice %312 {offsets = [0, 0], sizes = [8, 1], strides = [1, 1]} : vector<32x1xf32> to vector<8x1xf32>
    %316 = vector.extract_strided_slice %313 {offsets = [0, 0], sizes = [1, 8], strides = [1, 1]} : vector<1x32xf32> to vector<1x8xf32>
    %317 = vector.broadcast %315 : vector<8x1xf32> to vector<8x8xf32>
    %318 = vector.broadcast %316 : vector<1x8xf32> to vector<8x8xf32>
    %319 = arith.mulf %317, %318 : vector<8x8xf32>
    %320 = vector.extract_strided_slice %312 {offsets = [8, 0], sizes = [8, 1], strides = [1, 1]} : vector<32x1xf32> to vector<8x1xf32>
    %321 = vector.extract_strided_slice %313 {offsets = [0, 8], sizes = [1, 8], strides = [1, 1]} : vector<1x32xf32> to vector<1x8xf32>
    %322 = vector.broadcast %320 : vector<8x1xf32> to vector<8x8xf32>
    %323 = vector.broadcast %321 : vector<1x8xf32> to vector<8x8xf32>
    %324 = arith.mulf %322, %323 : vector<8x8xf32>
    %325 = arith.addf %319, %324 : vector<8x8xf32>
    %326 = vector.extract_strided_slice %312 {offsets = [16, 0], sizes = [8, 1], strides = [1, 1]} : vector<32x1xf32> to vector<8x1xf32>
    %327 = vector.extract_strided_slice %313 {offsets = [0, 16], sizes = [1, 8], strides = [1, 1]} : vector<1x32xf32> to vector<1x8xf32>
    %328 = vector.broadcast %326 : vector<8x1xf32> to vector<8x8xf32>
    %329 = vector.broadcast %327 : vector<1x8xf32> to vector<8x8xf32>
    %330 = arith.mulf %328, %329 : vector<8x8xf32>
    %331 = arith.addf %325, %330 : vector<8x8xf32>
    %332 = vector.extract_strided_slice %312 {offsets = [24, 0], sizes = [8, 1], strides = [1, 1]} : vector<32x1xf32> to vector<8x1xf32>
    %333 = vector.extract_strided_slice %313 {offsets = [0, 24], sizes = [1, 8], strides = [1, 1]} : vector<1x32xf32> to vector<1x8xf32>
    %334 = vector.broadcast %332 : vector<8x1xf32> to vector<8x8xf32>
    %335 = vector.broadcast %333 : vector<1x8xf32> to vector<8x8xf32>
    %336 = arith.mulf %334, %335 : vector<8x8xf32>
    %337 = arith.addf %331, %336 : vector<8x8xf32>
    %cst_67 = arith.constant dense<0xFF800000> : vector<8xf32>
    %338 = vector.multi_reduction <maximumf>, %337, %cst_67 [1] : vector<8x8xf32> to vector<8xf32>
    %339 = vector.shape_cast %338 : vector<8xf32> to vector<8x1xf32>
    %340 = vector.broadcast %339 : vector<8x1xf32> to vector<8x8xf32>
    %341 = arith.subf %337, %340 : vector<8x8xf32>
    %342 = math.exp %341 : vector<8x8xf32>
    %cst_68 = arith.constant dense<0.000000e+00> : vector<8xf32>
    %343 = vector.multi_reduction <add>, %342, %cst_68 [1] : vector<8x8xf32> to vector<8xf32>
    %344 = vector.shape_cast %343 : vector<8xf32> to vector<8x1xf32>
    %345 = tpu.reciprocal %344 {approx = true} : vector<8x1xf32> -> vector<8x1xf32>
    %346 = vector.broadcast %345 : vector<8x1xf32> to vector<8x8xf32>
    %347 = arith.mulf %342, %346 : vector<8x8xf32>
    %348 = vector.extract_strided_slice %314 {offsets = [0, 0], sizes = [1, 8], strides = [1, 1]} : vector<1x32xf32> to vector<1x8xf32>
    %349 = vector.broadcast %348 : vector<1x8xf32> to vector<8x8xf32>
    %350 = arith.mulf %347, %349 : vector<8x8xf32>
    %cst_69 = arith.constant dense<0.000000e+00> : vector<8xf32>
    %351 = vector.multi_reduction <add>, %350, %cst_69 [1] : vector<8x8xf32> to vector<8xf32>
    %352 = vector.shape_cast %351 : vector<8xf32> to vector<8x1xf32>
    %c0_70 = arith.constant 0 : index
    %c20 = arith.constant 20 : index
    %353 = vector.load %arg10[%c0_70, %c20] : memref<8x32xf32, #tpu.memory_space<vmem>>, vector<8x1xf32>
    tpu.vector_store %arg10[%c0_70, %c20], %352 {strides = array<i32>} : memref<8x32xf32, #tpu.memory_space<vmem>>, vector<8x1xf32>,
    %354 = vector.extract_strided_slice %314 {offsets = [0, 8], sizes = [1, 8], strides = [1, 1]} : vector<1x32xf32> to vector<1x8xf32>
    %355 = vector.broadcast %354 : vector<1x8xf32> to vector<8x8xf32>
    %356 = arith.mulf %347, %355 : vector<8x8xf32>
    %cst_71 = arith.constant dense<0.000000e+00> : vector<8xf32>
    %357 = vector.multi_reduction <add>, %356, %cst_71 [1] : vector<8x8xf32> to vector<8xf32>
    %358 = vector.shape_cast %357 : vector<8xf32> to vector<8x1xf32>
    %c0_72 = arith.constant 0 : index
    %c21 = arith.constant 21 : index
    %359 = vector.load %arg10[%c0_72, %c21] : memref<8x32xf32, #tpu.memory_space<vmem>>, vector<8x1xf32>
    tpu.vector_store %arg10[%c0_72, %c21], %358 {strides = array<i32>} : memref<8x32xf32, #tpu.memory_space<vmem>>, vector<8x1xf32>,
    %360 = vector.extract_strided_slice %314 {offsets = [0, 16], sizes = [1, 8], strides = [1, 1]} : vector<1x32xf32> to vector<1x8xf32>
    %361 = vector.broadcast %360 : vector<1x8xf32> to vector<8x8xf32>
    %362 = arith.mulf %347, %361 : vector<8x8xf32>
    %cst_73 = arith.constant dense<0.000000e+00> : vector<8xf32>
    %363 = vector.multi_reduction <add>, %362, %cst_73 [1] : vector<8x8xf32> to vector<8xf32>
    %364 = vector.shape_cast %363 : vector<8xf32> to vector<8x1xf32>
    %c0_74 = arith.constant 0 : index
    %c22 = arith.constant 22 : index
    %365 = vector.load %arg10[%c0_74, %c22] : memref<8x32xf32, #tpu.memory_space<vmem>>, vector<8x1xf32>
    tpu.vector_store %arg10[%c0_74, %c22], %364 {strides = array<i32>} : memref<8x32xf32, #tpu.memory_space<vmem>>, vector<8x1xf32>,
    %366 = vector.extract_strided_slice %314 {offsets = [0, 24], sizes = [1, 8], strides = [1, 1]} : vector<1x32xf32> to vector<1x8xf32>
    %367 = vector.broadcast %366 : vector<1x8xf32> to vector<8x8xf32>
    %368 = arith.mulf %347, %367 : vector<8x8xf32>
    %cst_75 = arith.constant dense<0.000000e+00> : vector<8xf32>
    %369 = vector.multi_reduction <add>, %368, %cst_75 [1] : vector<8x8xf32> to vector<8xf32>
    %370 = vector.shape_cast %369 : vector<8xf32> to vector<8x1xf32>
    %c0_76 = arith.constant 0 : index
    %c23 = arith.constant 23 : index
    %371 = vector.load %arg10[%c0_76, %c23] : memref<8x32xf32, #tpu.memory_space<vmem>>, vector<8x1xf32>
    tpu.vector_store %arg10[%c0_76, %c23], %370 {strides = array<i32>} : memref<8x32xf32, #tpu.memory_space<vmem>>, vector<8x1xf32>,
    %372 = vector.extract_strided_slice %3 {offsets = [0, 6], sizes = [32, 1], strides = [1, 1]} : vector<32x8xf32> to vector<32x1xf32>
    %373 = vector.extract_strided_slice %7 {offsets = [6, 0], sizes = [1, 32], strides = [1, 1]} : vector<8x32xf32> to vector<1x32xf32>
    %374 = vector.extract_strided_slice %11 {offsets = [6, 0], sizes = [1, 32], strides = [1, 1]} : vector<8x32xf32> to vector<1x32xf32>
    %375 = vector.extract_strided_slice %372 {offsets = [0, 0], sizes = [8, 1], strides = [1, 1]} : vector<32x1xf32> to vector<8x1xf32>
    %376 = vector.extract_strided_slice %373 {offsets = [0, 0], sizes = [1, 8], strides = [1, 1]} : vector<1x32xf32> to vector<1x8xf32>
    %377 = vector.broadcast %375 : vector<8x1xf32> to vector<8x8xf32>
    %378 = vector.broadcast %376 : vector<1x8xf32> to vector<8x8xf32>
    %379 = arith.mulf %377, %378 : vector<8x8xf32>
    %380 = vector.extract_strided_slice %372 {offsets = [8, 0], sizes = [8, 1], strides = [1, 1]} : vector<32x1xf32> to vector<8x1xf32>
    %381 = vector.extract_strided_slice %373 {offsets = [0, 8], sizes = [1, 8], strides = [1, 1]} : vector<1x32xf32> to vector<1x8xf32>
    %382 = vector.broadcast %380 : vector<8x1xf32> to vector<8x8xf32>
    %383 = vector.broadcast %381 : vector<1x8xf32> to vector<8x8xf32>
    %384 = arith.mulf %382, %383 : vector<8x8xf32>
    %385 = arith.addf %379, %384 : vector<8x8xf32>
    %386 = vector.extract_strided_slice %372 {offsets = [16, 0], sizes = [8, 1], strides = [1, 1]} : vector<32x1xf32> to vector<8x1xf32>
    %387 = vector.extract_strided_slice %373 {offsets = [0, 16], sizes = [1, 8], strides = [1, 1]} : vector<1x32xf32> to vector<1x8xf32>
    %388 = vector.broadcast %386 : vector<8x1xf32> to vector<8x8xf32>
    %389 = vector.broadcast %387 : vector<1x8xf32> to vector<8x8xf32>
    %390 = arith.mulf %388, %389 : vector<8x8xf32>
    %391 = arith.addf %385, %390 : vector<8x8xf32>
    %392 = vector.extract_strided_slice %372 {offsets = [24, 0], sizes = [8, 1], strides = [1, 1]} : vector<32x1xf32> to vector<8x1xf32>
    %393 = vector.extract_strided_slice %373 {offsets = [0, 24], sizes = [1, 8], strides = [1, 1]} : vector<1x32xf32> to vector<1x8xf32>
    %394 = vector.broadcast %392 : vector<8x1xf32> to vector<8x8xf32>
    %395 = vector.broadcast %393 : vector<1x8xf32> to vector<8x8xf32>
    %396 = arith.mulf %394, %395 : vector<8x8xf32>
    %397 = arith.addf %391, %396 : vector<8x8xf32>
    %cst_77 = arith.constant dense<0xFF800000> : vector<8xf32>
    %398 = vector.multi_reduction <maximumf>, %397, %cst_77 [1] : vector<8x8xf32> to vector<8xf32>
    %399 = vector.shape_cast %398 : vector<8xf32> to vector<8x1xf32>
    %400 = vector.broadcast %399 : vector<8x1xf32> to vector<8x8xf32>
    %401 = arith.subf %397, %400 : vector<8x8xf32>
    %402 = math.exp %401 : vector<8x8xf32>
    %cst_78 = arith.constant dense<0.000000e+00> : vector<8xf32>
    %403 = vector.multi_reduction <add>, %402, %cst_78 [1] : vector<8x8xf32> to vector<8xf32>
    %404 = vector.shape_cast %403 : vector<8xf32> to vector<8x1xf32>
    %405 = tpu.reciprocal %404 {approx = true} : vector<8x1xf32> -> vector<8x1xf32>
    %406 = vector.broadcast %405 : vector<8x1xf32> to vector<8x8xf32>
    %407 = arith.mulf %402, %406 : vector<8x8xf32>
    %408 = vector.extract_strided_slice %374 {offsets = [0, 0], sizes = [1, 8], strides = [1, 1]} : vector<1x32xf32> to vector<1x8xf32>
    %409 = vector.broadcast %408 : vector<1x8xf32> to vector<8x8xf32>
    %410 = arith.mulf %407, %409 : vector<8x8xf32>
    %cst_79 = arith.constant dense<0.000000e+00> : vector<8xf32>
    %411 = vector.multi_reduction <add>, %410, %cst_79 [1] : vector<8x8xf32> to vector<8xf32>
    %412 = vector.shape_cast %411 : vector<8xf32> to vector<8x1xf32>
    %c0_80 = arith.constant 0 : index
    %c24 = arith.constant 24 : index
    %413 = vector.load %arg10[%c0_80, %c24] : memref<8x32xf32, #tpu.memory_space<vmem>>, vector<8x1xf32>
    tpu.vector_store %arg10[%c0_80, %c24], %412 {strides = array<i32>} : memref<8x32xf32, #tpu.memory_space<vmem>>, vector<8x1xf32>,
    %414 = vector.extract_strided_slice %374 {offsets = [0, 8], sizes = [1, 8], strides = [1, 1]} : vector<1x32xf32> to vector<1x8xf32>
    %415 = vector.broadcast %414 : vector<1x8xf32> to vector<8x8xf32>
    %416 = arith.mulf %407, %415 : vector<8x8xf32>
    %cst_81 = arith.constant dense<0.000000e+00> : vector<8xf32>
    %417 = vector.multi_reduction <add>, %416, %cst_81 [1] : vector<8x8xf32> to vector<8xf32>
    %418 = vector.shape_cast %417 : vector<8xf32> to vector<8x1xf32>
    %c0_82 = arith.constant 0 : index
    %c25 = arith.constant 25 : index
    %419 = vector.load %arg10[%c0_82, %c25] : memref<8x32xf32, #tpu.memory_space<vmem>>, vector<8x1xf32>
    tpu.vector_store %arg10[%c0_82, %c25], %418 {strides = array<i32>} : memref<8x32xf32, #tpu.memory_space<vmem>>, vector<8x1xf32>,
    %420 = vector.extract_strided_slice %374 {offsets = [0, 16], sizes = [1, 8], strides = [1, 1]} : vector<1x32xf32> to vector<1x8xf32>
    %421 = vector.broadcast %420 : vector<1x8xf32> to vector<8x8xf32>
    %422 = arith.mulf %407, %421 : vector<8x8xf32>
    %cst_83 = arith.constant dense<0.000000e+00> : vector<8xf32>
    %423 = vector.multi_reduction <add>, %422, %cst_83 [1] : vector<8x8xf32> to vector<8xf32>
    %424 = vector.shape_cast %423 : vector<8xf32> to vector<8x1xf32>
    %c0_84 = arith.constant 0 : index
    %c26 = arith.constant 26 : index
    %425 = vector.load %arg10[%c0_84, %c26] : memref<8x32xf32, #tpu.memory_space<vmem>>, vector<8x1xf32>
    tpu.vector_store %arg10[%c0_84, %c26], %424 {strides = array<i32>} : memref<8x32xf32, #tpu.memory_space<vmem>>, vector<8x1xf32>,
    %426 = vector.extract_strided_slice %374 {offsets = [0, 24], sizes = [1, 8], strides = [1, 1]} : vector<1x32xf32> to vector<1x8xf32>
    %427 = vector.broadcast %426 : vector<1x8xf32> to vector<8x8xf32>
    %428 = arith.mulf %407, %427 : vector<8x8xf32>
    %cst_85 = arith.constant dense<0.000000e+00> : vector<8xf32>
    %429 = vector.multi_reduction <add>, %428, %cst_85 [1] : vector<8x8xf32> to vector<8xf32>
    %430 = vector.shape_cast %429 : vector<8xf32> to vector<8x1xf32>
    %c0_86 = arith.constant 0 : index
    %c27 = arith.constant 27 : index
    %431 = vector.load %arg10[%c0_86, %c27] : memref<8x32xf32, #tpu.memory_space<vmem>>, vector<8x1xf32>
    tpu.vector_store %arg10[%c0_86, %c27], %430 {strides = array<i32>} : memref<8x32xf32, #tpu.memory_space<vmem>>, vector<8x1xf32>,
    %432 = vector.extract_strided_slice %3 {offsets = [0, 7], sizes = [32, 1], strides = [1, 1]} : vector<32x8xf32> to vector<32x1xf32>
    %433 = vector.extract_strided_slice %7 {offsets = [7, 0], sizes = [1, 32], strides = [1, 1]} : vector<8x32xf32> to vector<1x32xf32>
    %434 = vector.extract_strided_slice %11 {offsets = [7, 0], sizes = [1, 32], strides = [1, 1]} : vector<8x32xf32> to vector<1x32xf32>
    %435 = vector.extract_strided_slice %432 {offsets = [0, 0], sizes = [8, 1], strides = [1, 1]} : vector<32x1xf32> to vector<8x1xf32>
    %436 = vector.extract_strided_slice %433 {offsets = [0, 0], sizes = [1, 8], strides = [1, 1]} : vector<1x32xf32> to vector<1x8xf32>
    %437 = vector.broadcast %435 : vector<8x1xf32> to vector<8x8xf32>
    %438 = vector.broadcast %436 : vector<1x8xf32> to vector<8x8xf32>
    %439 = arith.mulf %437, %438 : vector<8x8xf32>
    %440 = vector.extract_strided_slice %432 {offsets = [8, 0], sizes = [8, 1], strides = [1, 1]} : vector<32x1xf32> to vector<8x1xf32>
    %441 = vector.extract_strided_slice %433 {offsets = [0, 8], sizes = [1, 8], strides = [1, 1]} : vector<1x32xf32> to vector<1x8xf32>
    %442 = vector.broadcast %440 : vector<8x1xf32> to vector<8x8xf32>
    %443 = vector.broadcast %441 : vector<1x8xf32> to vector<8x8xf32>
    %444 = arith.mulf %442, %443 : vector<8x8xf32>
    %445 = arith.addf %439, %444 : vector<8x8xf32>
    %446 = vector.extract_strided_slice %432 {offsets = [16, 0], sizes = [8, 1], strides = [1, 1]} : vector<32x1xf32> to vector<8x1xf32>
    %447 = vector.extract_strided_slice %433 {offsets = [0, 16], sizes = [1, 8], strides = [1, 1]} : vector<1x32xf32> to vector<1x8xf32>
    %448 = vector.broadcast %446 : vector<8x1xf32> to vector<8x8xf32>
    %449 = vector.broadcast %447 : vector<1x8xf32> to vector<8x8xf32>
    %450 = arith.mulf %448, %449 : vector<8x8xf32>
    %451 = arith.addf %445, %450 : vector<8x8xf32>
    %452 = vector.extract_strided_slice %432 {offsets = [24, 0], sizes = [8, 1], strides = [1, 1]} : vector<32x1xf32> to vector<8x1xf32>
    %453 = vector.extract_strided_slice %433 {offsets = [0, 24], sizes = [1, 8], strides = [1, 1]} : vector<1x32xf32> to vector<1x8xf32>
    %454 = vector.broadcast %452 : vector<8x1xf32> to vector<8x8xf32>
    %455 = vector.broadcast %453 : vector<1x8xf32> to vector<8x8xf32>
    %456 = arith.mulf %454, %455 : vector<8x8xf32>
    %457 = arith.addf %451, %456 : vector<8x8xf32>
    %cst_87 = arith.constant dense<0xFF800000> : vector<8xf32>
    %458 = vector.multi_reduction <maximumf>, %457, %cst_87 [1] : vector<8x8xf32> to vector<8xf32>
    %459 = vector.shape_cast %458 : vector<8xf32> to vector<8x1xf32>
    %460 = vector.broadcast %459 : vector<8x1xf32> to vector<8x8xf32>
    %461 = arith.subf %457, %460 : vector<8x8xf32>
    %462 = math.exp %461 : vector<8x8xf32>
    %cst_88 = arith.constant dense<0.000000e+00> : vector<8xf32>
    %463 = vector.multi_reduction <add>, %462, %cst_88 [1] : vector<8x8xf32> to vector<8xf32>
    %464 = vector.shape_cast %463 : vector<8xf32> to vector<8x1xf32>
    %465 = tpu.reciprocal %464 {approx = true} : vector<8x1xf32> -> vector<8x1xf32>
    %466 = vector.broadcast %465 : vector<8x1xf32> to vector<8x8xf32>
    %467 = arith.mulf %462, %466 : vector<8x8xf32>
    %468 = vector.extract_strided_slice %434 {offsets = [0, 0], sizes = [1, 8], strides = [1, 1]} : vector<1x32xf32> to vector<1x8xf32>
    %469 = vector.broadcast %468 : vector<1x8xf32> to vector<8x8xf32>
    %470 = arith.mulf %467, %469 : vector<8x8xf32>
    %cst_89 = arith.constant dense<0.000000e+00> : vector<8xf32>
    %471 = vector.multi_reduction <add>, %470, %cst_89 [1] : vector<8x8xf32> to vector<8xf32>
    %472 = vector.shape_cast %471 : vector<8xf32> to vector<8x1xf32>
    %c0_90 = arith.constant 0 : index
    %c28 = arith.constant 28 : index
    %473 = vector.load %arg10[%c0_90, %c28] : memref<8x32xf32, #tpu.memory_space<vmem>>, vector<8x1xf32>
    tpu.vector_store %arg10[%c0_90, %c28], %472 {strides = array<i32>} : memref<8x32xf32, #tpu.memory_space<vmem>>, vector<8x1xf32>,
    %474 = vector.extract_strided_slice %434 {offsets = [0, 8], sizes = [1, 8], strides = [1, 1]} : vector<1x32xf32> to vector<1x8xf32>
    %475 = vector.broadcast %474 : vector<1x8xf32> to vector<8x8xf32>
    %476 = arith.mulf %467, %475 : vector<8x8xf32>
    %cst_91 = arith.constant dense<0.000000e+00> : vector<8xf32>
    %477 = vector.multi_reduction <add>, %476, %cst_91 [1] : vector<8x8xf32> to vector<8xf32>
    %478 = vector.shape_cast %477 : vector<8xf32> to vector<8x1xf32>
    %c0_92 = arith.constant 0 : index
    %c29 = arith.constant 29 : index
    %479 = vector.load %arg10[%c0_92, %c29] : memref<8x32xf32, #tpu.memory_space<vmem>>, vector<8x1xf32>
    tpu.vector_store %arg10[%c0_92, %c29], %478 {strides = array<i32>} : memref<8x32xf32, #tpu.memory_space<vmem>>, vector<8x1xf32>,
    %480 = vector.extract_strided_slice %434 {offsets = [0, 16], sizes = [1, 8], strides = [1, 1]} : vector<1x32xf32> to vector<1x8xf32>
    %481 = vector.broadcast %480 : vector<1x8xf32> to vector<8x8xf32>
    %482 = arith.mulf %467, %481 : vector<8x8xf32>
    %cst_93 = arith.constant dense<0.000000e+00> : vector<8xf32>
    %483 = vector.multi_reduction <add>, %482, %cst_93 [1] : vector<8x8xf32> to vector<8xf32>
    %484 = vector.shape_cast %483 : vector<8xf32> to vector<8x1xf32>
    %c0_94 = arith.constant 0 : index
    %c30 = arith.constant 30 : index
    %485 = vector.load %arg10[%c0_94, %c30] : memref<8x32xf32, #tpu.memory_space<vmem>>, vector<8x1xf32>
    tpu.vector_store %arg10[%c0_94, %c30], %484 {strides = array<i32>} : memref<8x32xf32, #tpu.memory_space<vmem>>, vector<8x1xf32>,
    %486 = vector.extract_strided_slice %434 {offsets = [0, 24], sizes = [1, 8], strides = [1, 1]} : vector<1x32xf32> to vector<1x8xf32>
    %487 = vector.broadcast %486 : vector<1x8xf32> to vector<8x8xf32>
    %488 = arith.mulf %467, %487 : vector<8x8xf32>
    %cst_95 = arith.constant dense<0.000000e+00> : vector<8xf32>
    %489 = vector.multi_reduction <add>, %488, %cst_95 [1] : vector<8x8xf32> to vector<8xf32>
    %490 = vector.shape_cast %489 : vector<8xf32> to vector<8x1xf32>
    %c0_96 = arith.constant 0 : index
    %c31 = arith.constant 31 : index
    %491 = vector.load %arg10[%c0_96, %c31] : memref<8x32xf32, #tpu.memory_space<vmem>>, vector<8x1xf32>
    tpu.vector_store %arg10[%c0_96, %c31], %490 {strides = array<i32>} : memref<8x32xf32, #tpu.memory_space<vmem>>, vector<8x1xf32>,
    %c0_97 = arith.constant 0 : index
    %c0_98 = arith.constant 0 : index
    %492 = vector.load %arg10[%c0_97, %c0_98] : memref<8x32xf32, #tpu.memory_space<vmem>>, vector<8x32xf32>
    %493 = arith.truncf %492 : vector<8x32xf32> to vector<8x32xbf16>
    %c0_99 = arith.constant 0 : index
    %c0_100 = arith.constant 0 : index
    %494 = vector.load %arg7[%c0_99, %c0_100] : memref<32x32xbf16, #tpu.memory_space<vmem>>, vector<32x32xbf16>
    %cst_101 = arith.constant dense<0.000000e+00> : vector<8x32xf32>
    %495 = tpu.matmul %493, %494, %cst_101 {dimension_numbers = #tpu.dot_dimension_numbers<[1], [1], [0], [0], [0, 0, 1, 0], [], []>} : vector<8x32xbf16>, vector<32x32xbf16>, vector<8x32xf32> -> vector<8x32xf32>
    %c0_102 = arith.constant 0 : index
    %c0_103 = arith.constant 0 : index
    %496 = vector.load %arg8[%c0_102, %c0_103] : memref<1x32xf32, #tpu.memory_space<vmem>>, vector<1x32xf32>
    %497 = vector.broadcast %496 : vector<1x32xf32> to vector<8x32xf32>
    %498 = arith.addf %495, %497 : vector<8x32xf32>
    %c0_104 = arith.constant 0 : index
    %c0_105 = arith.constant 0 : index
    %c0_106 = arith.constant 0 : index
    %499 = vector.load %arg9[%c0_104, %c0_105, %c0_106] : memref<1x8x32xf32, #tpu.memory_space<vmem>>, vector<1x8x32xf32>
    %500 = vector.shape_cast %499 : vector<1x8x32xf32> to vector<8x32xf32>
    %501 = vector.shape_cast %498 : vector<8x32xf32> to vector<1x8x32xf32>
    tpu.vector_store %arg9[%c0_104, %c0_105, %c0_106], %501 {strides = array<i32>} : memref<1x8x32xf32, #tpu.memory_space<vmem>>, vector<1x8x32xf32>,
    return
  }
  func.func @transform_0(%arg0: i32) -> (i32, i32, i32) {
    %c0_i32 = arith.constant 0 : i32
    %c0_i32_0 = arith.constant 0 : i32
    %c0_i32_1 = arith.constant 0 : i32
    return %arg0, %c0_i32, %c0_i32_0 : i32, i32, i32
  }
  func.func @transform_1(%arg0: i32) -> (i32, i32, i32) {
    %c0_i32 = arith.constant 0 : i32
    %c0_i32_0 = arith.constant 0 : i32
    %c0_i32_1 = arith.constant 0 : i32
    return %arg0, %c0_i32, %c0_i32_0 : i32, i32, i32
  }
  func.func @transform_2(%arg0: i32) -> (i32, i32, i32) {
    %c0_i32 = arith.constant 0 : i32
    %c0_i32_0 = arith.constant 0 : i32
    %c0_i32_1 = arith.constant 0 : i32
    return %arg0, %c0_i32, %c0_i32_0 : i32, i32, i32
  }
  func.func @transform_3(%arg0: i32) -> (i32, i32) {
    %c0_i32 = arith.constant 0 : i32
    %c0_i32_0 = arith.constant 0 : i32
    %c0_i32_1 = arith.constant 0 : i32
    return %c0_i32, %c0_i32_0 : i32, i32
  }
  func.func @transform_4(%arg0: i32) -> (i32, i32) {
    %c0_i32 = arith.constant 0 : i32
    %c0_i32_0 = arith.constant 0 : i32
    %c0_i32_1 = arith.constant 0 : i32
    return %c0_i32, %c0_i32_0 : i32, i32
  }
  func.func @transform_5(%arg0: i32) -> (i32, i32) {
    %c0_i32 = arith.constant 0 : i32
    %c0_i32_0 = arith.constant 0 : i32
    %c0_i32_1 = arith.constant 0 : i32
    return %c0_i32, %c0_i32_0 : i32, i32
  }
  func.func @transform_6(%arg0: i32) -> (i32, i32) {
    %c0_i32 = arith.constant 0 : i32
    %c0_i32_0 = arith.constant 0 : i32
    %c0_i32_1 = arith.constant 0 : i32
    return %c0_i32, %c0_i32_0 : i32, i32
  }
  func.func @transform_7(%arg0: i32) -> (i32, i32) {
    %c0_i32 = arith.constant 0 : i32
    %c0_i32_0 = arith.constant 0 : i32
    %c0_i32_1 = arith.constant 0 : i32
    return %c0_i32, %c0_i32_0 : i32, i32
  }
  func.func @transform_8(%arg0: i32) -> (i32, i32, i32) {
    %c0_i32 = arith.constant 0 : i32
    %c0_i32_0 = arith.constant 0 : i32
    %c0_i32_1 = arith.constant 0 : i32
    return %arg0, %c0_i32, %c0_i32_0 : i32, i32, i32
  }
}

</mosaic_0001>

<llo_original>
// kernel: _mha_forward.1
$region0: #{_mha_forward.1}
  #allocation0 [shape = 'u32[]', space=smem, size = 0x4, offset = 0x4, fixed_abs, tag = 'smem constant byte address 0x4 - core index']
  #allocation1 [shape = 'u32[144,128]{1,0:T(1,128)}', space=vmem, size = 0x12000, scoped, tag = 'internal scratch']
  #allocation2 [shape = 'f32[8,32]{1,0:T(8,128)}', space=vmem, size = 0x1000, scoped, tag = 'scratch operand']
  %s0 = inlined_call_operand.vmem [shape: bf16[2,8,32], index: 0, kind: input, shape index: {}]
  %s1 = inlined_call_operand.vmem [shape: bf16[2,8,32], index: 1, kind: input, shape index: {}]
  %s2 = inlined_call_operand.vmem [shape: bf16[2,8,32], index: 2, kind: input, shape index: {}]
  %s3 = inlined_call_operand.vmem [shape: bf16[32,32], index: 3, kind: input, shape index: {}]
  %s4 = inlined_call_operand.vmem [shape: bf16[32,32], index: 4, kind: input, shape index: {}]
  %s5 = inlined_call_operand.vmem [shape: bf16[32,32], index: 5, kind: input, shape index: {}]
  %s6 = inlined_call_operand.vmem [shape: bf16[32,32], index: 6, kind: input, shape index: {}]
  %s7 = inlined_call_operand.vmem [shape: f32[1,32], index: 7, kind: input, shape index: {}]
  %s8 = inlined_call_operand.hbm [shape: f32[2,8,32], index: 8, kind: output, shape index: {}]
  %s9 = sld [smem:[#allocation0]]
  $region65: #{_mha_forward.1} parent=0
    _
  %s11 = ssub.s32 1, %s9
  %s12 = scalar_select 0, %s11, %s9
  $region1: #{_mha_forward.1} parent=0
    #allocation3 [shape = 'u8[8192]{0}', space=vmem, size = 0x2000, scoped, tag = 'output window, operand 0']
    #allocation4 [shape = 's32[2]{0}', space=sflag, size = 0x8, scoped, tag = 'scoped memory for _mha_forward.1']
    %13 = vsyncpa [#allocation4], 0
    %s14 = scalar_lea.sflag [#allocation4], 1
    %15 = vsyncpa %s14, 0
    loop: start=0, step=1, limit=4
    $region2: #{_mha_forward.1} parent=1 // loop_pre_header
      _
    $region3: #{_mha_forward.1} parent=1 // loop_header
      %s17 = sphi 0, %s21
      %p18 = scmp.ge.s32.totalorder %s17, 4
      %s27 = sphi 0, %s29
      %s30 = sphi 0, %s27
      %s31 = sphi 0, %s30
      %s47 = sphi 0, %s31
      %s53 = sphi 0, %s55
      %s56 = sphi 0, %s53
      %s57 = sphi 0, %s56
      %s73 = sphi 0, %s57
      %s79 = sphi 0, %s81
      %s82 = sphi 0, %s79
      %s83 = sphi 0, %s82
      %s99 = sphi 0, %s83
      %s103 = sphi 0, %s103
      %s105 = sphi 0, %s103
      %s106 = sphi 0, %s105
      %s120 = sphi 0, %s106
      %s124 = sphi 0, %s124
      %s126 = sphi 0, %s124
      %s127 = sphi 0, %s126
      %s141 = sphi 0, %s127
      %s145 = sphi 0, %s145
      %s147 = sphi 0, %s145
      %s148 = sphi 0, %s147
      %s162 = sphi 0, %s148
      %s166 = sphi 0, %s166
      %s168 = sphi 0, %s166
      %s169 = sphi 0, %s168
      %s183 = sphi 0, %s169
      %s187 = sphi 0, %s187
      %s189 = sphi 0, %s187
      %s190 = sphi 0, %s189
      %s204 = sphi 0, %s190
      %s210 = sphi 0, %s212
      %s213 = sphi 0, %s210
      %s214 = sphi 0, %s213
      %s230 = sphi 0, %s214
    $region4: #{_mha_forward.1} parent=1 // loop_header_branch
      %20 = sbr.rel (%p18) target = $region8
    $region5: #{_mha_forward.1} parent=1 // loop_body
      %s22 = ssub.s32 %s17, 1
      %s23 = ssub.s32 %s17, 2
      %s24 = sadd.s32 %s17, 1
      %s25 = ssub.s32 %s17, %s24
      %p26 = scmp.eq.s32.totalorder %s25, 0
      %s28 = sadd.s32 %s27, 1
      %s29 = scalar_select %p26, %s27, %s28
      %p32 = pneg %p26
      %p33 = scmp.eq.s32.totalorder %s17, 1
      %p34 = por %p32, %p33
      %p35 = scmp.ne.s32.totalorder %s27, %s30
      %p36 = scmp.eq.s32.totalorder %s17, 0
      %p37 = por %p35, %p36
      %p38 = scmp.ne.s32.totalorder %s27, %s30
      %p39 = scmp.eq.s32.totalorder %s22, 1
      %p40 = por %p38, %p39
      %p41 = scmp.ne.s32.totalorder %s30, %s31
      %p42 = scmp.eq.s32.totalorder %s22, 0
      %p43 = por %p41, %p42
      %p44 = scmp.ne.s32.totalorder %s30, %s31
      %p45 = scmp.eq.s32.totalorder %s23, 1
      %p46 = por %p44, %p45
      %p48 = scmp.ne.s32.totalorder %s31, %s47
      %p49 = scmp.eq.s32.totalorder %s23, 0
      %p50 = por %p48, %p49
      %s51 = ssub.s32 %s17, %s24
      %p52 = scmp.eq.s32.totalorder %s51, 0
      %s54 = sadd.s32 %s53, 1
      %s55 = scalar_select %p52, %s53, %s54
      %p58 = pneg %p52
      %p59 = scmp.eq.s32.totalorder %s17, 1
      %p60 = por %p58, %p59
      %p61 = scmp.ne.s32.totalorder %s53, %s56
      %p62 = scmp.eq.s32.totalorder %s17, 0
      %p63 = por %p61, %p62
      %p64 = scmp.ne.s32.totalorder %s53, %s56
      %p65 = scmp.eq.s32.totalorder %s22, 1
      %p66 = por %p64, %p65
      %p67 = scmp.ne.s32.totalorder %s56, %s57
      %p68 = scmp.eq.s32.totalorder %s22, 0
      %p69 = por %p67, %p68
      %p70 = scmp.ne.s32.totalorder %s56, %s57
      %p71 = scmp.eq.s32.totalorder %s23, 1
      %p72 = por %p70, %p71
      %p74 = scmp.ne.s32.totalorder %s57, %s73
      %p75 = scmp.eq.s32.totalorder %s23, 0
      %p76 = por %p74, %p75
      %s77 = ssub.s32 %s17, %s24
      %p78 = scmp.eq.s32.totalorder %s77, 0
      %s80 = sadd.s32 %s79, 1
      %s81 = scalar_select %p78, %s79, %s80
      %p84 = pneg %p78
      %p85 = scmp.eq.s32.totalorder %s17, 1
      %p86 = por %p84, %p85
      %p87 = scmp.ne.s32.totalorder %s79, %s82
      %p88 = scmp.eq.s32.totalorder %s17, 0
      %p89 = por %p87, %p88
      %p90 = scmp.ne.s32.totalorder %s79, %s82
      %p91 = scmp.eq.s32.totalorder %s22, 1
      %p92 = por %p90, %p91
      %p93 = scmp.ne.s32.totalorder %s82, %s83
      %p94 = scmp.eq.s32.totalorder %s22, 0
      %p95 = por %p93, %p94
      %p96 = scmp.ne.s32.totalorder %s82, %s83
      %p97 = scmp.eq.s32.totalorder %s23, 1
      %p98 = por %p96, %p97
      %p100 = scmp.ne.s32.totalorder %s83, %s99
      %p101 = scmp.eq.s32.totalorder %s23, 0
      %p102 = por %p100, %p101
      %s104 = sadd.s32 %s103, 1
      %p107 = scmp.eq.s32.totalorder %s17, 1
      %p108 = scmp.ne.s32.totalorder %s103, %s105
      %p109 = scmp.eq.s32.totalorder %s17, 0
      %p110 = por %p108, %p109
      %p111 = scmp.ne.s32.totalorder %s103, %s105
      %p112 = scmp.eq.s32.totalorder %s22, 1
      %p113 = por %p111, %p112
      %p114 = scmp.ne.s32.totalorder %s105, %s106
      %p115 = scmp.eq.s32.totalorder %s22, 0
      %p116 = por %p114, %p115
      %p117 = scmp.ne.s32.totalorder %s105, %s106
      %p118 = scmp.eq.s32.totalorder %s23, 1
      %p119 = por %p117, %p118
      %p121 = scmp.ne.s32.totalorder %s106, %s120
      %p122 = scmp.eq.s32.totalorder %s23, 0
      %p123 = por %p121, %p122
      %s125 = sadd.s32 %s124, 1
      %p128 = scmp.eq.s32.totalorder %s17, 1
      %p129 = scmp.ne.s32.totalorder %s124, %s126
      %p130 = scmp.eq.s32.totalorder %s17, 0
      %p131 = por %p129, %p130
      %p132 = scmp.ne.s32.totalorder %s124, %s126
      %p133 = scmp.eq.s32.totalorder %s22, 1
      %p134 = por %p132, %p133
      %p135 = scmp.ne.s32.totalorder %s126, %s127
      %p136 = scmp.eq.s32.totalorder %s22, 0
      %p137 = por %p135, %p136
      %p138 = scmp.ne.s32.totalorder %s126, %s127
      %p139 = scmp.eq.s32.totalorder %s23, 1
      %p140 = por %p138, %p139
      %p142 = scmp.ne.s32.totalorder %s127, %s141
      %p143 = scmp.eq.s32.totalorder %s23, 0
      %p144 = por %p142, %p143
      %s146 = sadd.s32 %s145, 1
      %p149 = scmp.eq.s32.totalorder %s17, 1
      %p150 = scmp.ne.s32.totalorder %s145, %s147
      %p151 = scmp.eq.s32.totalorder %s17, 0
      %p152 = por %p150, %p151
      %p153 = scmp.ne.s32.totalorder %s145, %s147
      %p154 = scmp.eq.s32.totalorder %s22, 1
      %p155 = por %p153, %p154
      %p156 = scmp.ne.s32.totalorder %s147, %s148
      %p157 = scmp.eq.s32.totalorder %s22, 0
      %p158 = por %p156, %p157
      %p159 = scmp.ne.s32.totalorder %s147, %s148
      %p160 = scmp.eq.s32.totalorder %s23, 1
      %p161 = por %p159, %p160
      %p163 = scmp.ne.s32.totalorder %s148, %s162
      %p164 = scmp.eq.s32.totalorder %s23, 0
      %p165 = por %p163, %p164
      %s167 = sadd.s32 %s166, 1
      %p170 = scmp.eq.s32.totalorder %s17, 1
      %p171 = scmp.ne.s32.totalorder %s166, %s168
      %p172 = scmp.eq.s32.totalorder %s17, 0
      %p173 = por %p171, %p172
      %p174 = scmp.ne.s32.totalorder %s166, %s168
      %p175 = scmp.eq.s32.totalorder %s22, 1
      %p176 = por %p174, %p175
      %p177 = scmp.ne.s32.totalorder %s168, %s169
      %p178 = scmp.eq.s32.totalorder %s22, 0
      %p179 = por %p177, %p178
      %p180 = scmp.ne.s32.totalorder %s168, %s169
      %p181 = scmp.eq.s32.totalorder %s23, 1
      %p182 = por %p180, %p181
      %p184 = scmp.ne.s32.totalorder %s169, %s183
      %p185 = scmp.eq.s32.totalorder %s23, 0
      %p186 = por %p184, %p185
      %s188 = sadd.s32 %s187, 1
      %p191 = scmp.eq.s32.totalorder %s17, 1
      %p192 = scmp.ne.s32.totalorder %s187, %s189
      %p193 = scmp.eq.s32.totalorder %s17, 0
      %p194 = por %p192, %p193
      %p195 = scmp.ne.s32.totalorder %s187, %s189
      %p196 = scmp.eq.s32.totalorder %s22, 1
      %p197 = por %p195, %p196
      %p198 = scmp.ne.s32.totalorder %s189, %s190
      %p199 = scmp.eq.s32.totalorder %s22, 0
      %p200 = por %p198, %p199
      %p201 = scmp.ne.s32.totalorder %s189, %s190
      %p202 = scmp.eq.s32.totalorder %s23, 1
      %p203 = por %p201, %p202
      %p205 = scmp.ne.s32.totalorder %s190, %s204
      %p206 = scmp.eq.s32.totalorder %s23, 0
      %p207 = por %p205, %p206
      %s208 = ssub.s32 %s17, %s24
      %p209 = scmp.eq.s32.totalorder %s208, 0
      %s211 = sadd.s32 %s210, 1
      %s212 = scalar_select %p209, %s210, %s211
      %p215 = pneg %p209
      %p216 = scmp.eq.s32.totalorder %s17, 1
      %p217 = por %p215, %p216
      %p218 = scmp.ne.s32.totalorder %s210, %s213
      %p219 = scmp.eq.s32.totalorder %s17, 0
      %p220 = por %p218, %p219
      %p221 = scmp.ne.s32.totalorder %s210, %s213
      %p222 = scmp.eq.s32.totalorder %s22, 1
      %p223 = por %p221, %p222
      %p224 = scmp.ne.s32.totalorder %s213, %s214
      %p225 = scmp.eq.s32.totalorder %s22, 0
      %p226 = por %p224, %p225
      %p227 = scmp.ne.s32.totalorder %s213, %s214
      %p228 = scmp.eq.s32.totalorder %s23, 1
      %p229 = por %p227, %p228
      %p231 = scmp.ne.s32.totalorder %s214, %s230
      %p232 = scmp.eq.s32.totalorder %s23, 0
      %p233 = por %p231, %p232
      %p234 = scmp.le.s32.totalorder 1, %s17
      %p235 = scmp.lt.s32.totalorder %s17, 3
      %p236 = pnand %p234, %p235
      %p237 = pneg %p236
      // Predicated region
      $region9: #{_mha_forward.1} parent=5 // pred_check
        _
      $region10: #{_mha_forward.1} parent=5 // pred_check_branch
        %239 = sbr.rel (%p236) target = $region12
      $region11: #{_mha_forward.1} parent=5 // pred_region
        %s240 = ssub.s32 %s17, 1
        // Predicated region
        $region13: #{_mha_forward.1} parent=11 // pred_check
          %p241 = pneg %p116
        $region14: #{_mha_forward.1} parent=11 // pred_check_branch
          %243 = sbr.rel (%p241) target = $region16
        $region15: #{_mha_forward.1} parent=11 // pred_region
          _
        $region16: #{_mha_forward.1} parent=11 // pred_fallthru
          _
        // Predicated region
        $region17: #{_mha_forward.1} parent=11 // pred_check
          %p244 = pneg %p137
        $region18: #{_mha_forward.1} parent=11 // pred_check_branch
          %246 = sbr.rel (%p244) target = $region20
        $region19: #{_mha_forward.1} parent=11 // pred_region
          _
        $region20: #{_mha_forward.1} parent=11 // pred_fallthru
          _
        // Predicated region
        $region21: #{_mha_forward.1} parent=11 // pred_check
          %p247 = pneg %p158
        $region22: #{_mha_forward.1} parent=11 // pred_check_branch
          %249 = sbr.rel (%p247) target = $region24
        $region23: #{_mha_forward.1} parent=11 // pred_region
          _
        $region24: #{_mha_forward.1} parent=11 // pred_fallthru
          _
        // Predicated region
        $region25: #{_mha_forward.1} parent=11 // pred_check
          %p250 = pneg %p179
        $region26: #{_mha_forward.1} parent=11 // pred_check_branch
          %252 = sbr.rel (%p250) target = $region28
        $region27: #{_mha_forward.1} parent=11 // pred_region
          _
        $region28: #{_mha_forward.1} parent=11 // pred_fallthru
          _
        // Predicated region
        $region29: #{_mha_forward.1} parent=11 // pred_check
          %p253 = pneg %p200
        $region30: #{_mha_forward.1} parent=11 // pred_check_branch
          %255 = sbr.rel (%p253) target = $region32
        $region31: #{_mha_forward.1} parent=11 // pred_region
          _
        $region32: #{_mha_forward.1} parent=11 // pred_fallthru
          _
      $region12: #{_mha_forward.1} parent=5 // pred_fallthru
        _
      %p256 = scmp.lt.s32.totalorder %s17, 2
      // Predicated region
      $region33: #{_mha_forward.1} parent=5 // pred_check
        %p257 = pneg %p256
      $region34: #{_mha_forward.1} parent=5 // pred_check_branch
        %259 = sbr.rel (%p257) target = $region36
      $region35: #{_mha_forward.1} parent=5 // pred_region
        // Predicated region
        $region37: #{_mha_forward.1} parent=35 // pred_check
          %p260 = pneg %p37
        $region38: #{_mha_forward.1} parent=35 // pred_check_branch
          %262 = sbr.rel (%p260) target = $region40
        $region39: #{_mha_forward.1} parent=35 // pred_region
          %p263 = scmp.lt.s32.totalorder %s17, 1
          %s264 = scalar_select %p263, %s17, 1
          %s265 = smul.addr %s264, 4
          %s266 = scalar_lea.vmem %s0, %s265
        $region40: #{_mha_forward.1} parent=35 // pred_fallthru
          _
        // Predicated region
        $region41: #{_mha_forward.1} parent=35 // pred_check
          %p267 = pneg %p63
        $region42: #{_mha_forward.1} parent=35 // pred_check_branch
          %269 = sbr.rel (%p267) target = $region44
        $region43: #{_mha_forward.1} parent=35 // pred_region
          %p270 = scmp.lt.s32.totalorder %s17, 1
          %s271 = scalar_select %p270, %s17, 1
          %s272 = smul.addr %s271, 4
          %s273 = scalar_lea.vmem %s1, %s272
        $region44: #{_mha_forward.1} parent=35 // pred_fallthru
          _
        // Predicated region
        $region45: #{_mha_forward.1} parent=35 // pred_check
          %p274 = pneg %p89
        $region46: #{_mha_forward.1} parent=35 // pred_check_branch
          %276 = sbr.rel (%p274) target = $region48
        $region47: #{_mha_forward.1} parent=35 // pred_region
          %p277 = scmp.lt.s32.totalorder %s17, 1
          %s278 = scalar_select %p277, %s17, 1
          %s279 = smul.addr %s278, 4
          %s280 = scalar_lea.vmem %s2, %s279
        $region48: #{_mha_forward.1} parent=35 // pred_fallthru
          _
      $region36: #{_mha_forward.1} parent=5 // pred_fallthru
        _
      %p281 = scmp.le.s32.totalorder 1, %s17
      %p282 = scmp.lt.s32.totalorder %s17, 3
      %p283 = pnand %p281, %p282
      %p284 = pneg %p283
      // Predicated region
      $region49: #{_mha_forward.1} parent=5 // pred_check
        _
      $region50: #{_mha_forward.1} parent=5 // pred_check_branch
        %286 = sbr.rel (%p283) target = $region52
      $region51: #{_mha_forward.1} parent=5 // pred_region
        %s287 = ssub.s32 %s17, 1
        %p288 = scmp.lt.s32.totalorder %s22, 1
        %s289 = scalar_select %p288, %s22, 1
        %s290 = smul.addr %s289, 4
        %s291 = scalar_lea.vmem %s0, %s290
        %p292 = pneg %p43
        %p293 = pneg %p40
        %p294 = scmp.lt.s32.totalorder %s22, 1
        %s295 = scalar_select %p294, %s22, 1
        %s296 = smul.addr %s295, 4
        %s297 = scalar_lea.vmem %s1, %s296
        %p298 = pneg %p69
        %p299 = pneg %p66
        %p300 = scmp.lt.s32.totalorder %s22, 1
        %s301 = scalar_select %p300, %s22, 1
        %s302 = smul.addr %s301, 4
        %s303 = scalar_lea.vmem %s2, %s302
        %p304 = pneg %p95
        %p305 = pneg %p92
        %p306 = pneg %p116
        %p307 = pneg %p113
        %p308 = pneg %p137
        %p309 = pneg %p134
        %p310 = pneg %p158
        %p311 = pneg %p155
        %p312 = pneg %p179
        %p313 = pneg %p176
        %p314 = pneg %p200
        %p315 = pneg %p197
        %p316 = pneg %p226
        %p317 = pneg %p223
        %s318 = sand.u32 %s213, 1
        %s319 = scalar_lea.sflag [#allocation4], %s318
        %s320 = sand.u32 %s213, 1
        %s321 = smul.addr %s320, 8
        %s322 = scalar_lea.vmem [#allocation3], %s321
        %p323 = scmp.lt.s32.totalorder %s22, 1
        %s324 = scalar_select %p323, %s22, 1
        %s325 = smul.addr %s324, 4
        %s326 = scalar_lea.vmem %s0, %s325
        %p327 = scmp.lt.s32.totalorder %s22, 1
        %s328 = scalar_select %p327, %s22, 1
        %s329 = smul.addr %s328, 4
        %s330 = scalar_lea.vmem %s1, %s329
        %p331 = scmp.lt.s32.totalorder %s22, 1
        %s332 = scalar_select %p331, %s22, 1
        %s333 = smul.addr %s332, 4
        %s334 = scalar_lea.vmem %s2, %s333
        %v336 = vld [vmem:[%s3] sm:$0xf]
        %v337 = vld [vmem:[%s3 + $0x4] sm:$0xf]
        %v338 = vld [vmem:[%s3 + $0x8] sm:$0xf]
        %v339 = vld [vmem:[%s3 + $0xc] sm:$0xf]
        %v340 = vld [vmem:[%s326] sm:$0xf]
        %v345 = vunpack.c.l.b16 %v336
        %v346 = vunpack.c.l.b16 %v337
        %v347 = vunpack.c.l.b16 %v338
        %v348 = vunpack.c.l.b16 %v339
        %v349 = vpack.c.b16 %v346, %v345
        %v350 = vpack.c.b16 %v348, %v347
        %vm351 = vcmask 261120
        %v353 = vsel %vm351, %v349, 0
        %v356 = vsel %vm351, %v350, 0
        %v359 = vsel %vm351, %v340, 0
        %361 = vmatprep.subr.bf16.mxu0 0
        %362 = vmatpush1.bf16.xpose.msra.mxu0 0
        %363 = vmatprep.subr.bf16.mxu0 0
        %364 = vmatpush1.bf16.xpose.msra.mxu0 0
        %365 = vmatprep.subr.bf16.mxu0 0
        %366 = vmatpush1.bf16.xpose.msra.mxu0 0
        %367 = vmatprep.subr.bf16.mxu0 0
        %368 = vmatpush1.bf16.xpose.msra.mxu0 0
        %369 = vmatprep.subr.bf16.mxu0 0
        %370 = vmatpush1.bf16.xpose.msra.mxu0 0
        %371 = vmatprep.subr.bf16.mxu0 0
        %372 = vmatpush1.bf16.xpose.msra.mxu0 0
        %373 = vmatprep.subr.bf16.mxu0 0
        %374 = vmatpush1.bf16.xpose.msra.mxu0 0
        %375 = vmatprep.subr.bf16.mxu0 0
        %376 = vmatpush1.bf16.xpose.msra.mxu0 %v359
        %377 = vmatprep.subr.bf16.mxu0 0
        %378 = vmatpush2.bf16.xpose.msra.mxu0 0
        %379 = vmatprep.subr.bf16.mxu0 0
        %380 = vmatpush2.bf16.xpose.msra.mxu0 0
        %381 = vmatprep.subr.bf16.mxu0 0
        %382 = vmatpush2.bf16.xpose.msra.mxu0 0
        %383 = vmatprep.subr.bf16.mxu0 0
        %384 = vmatpush2.bf16.xpose.msra.mxu0 0
        %385 = vmatprep.subr.bf16.mxu0 0
        %386 = vmatpush2.bf16.xpose.msra.mxu0 0
        %387 = vmatprep.subr.bf16.mxu0 0
        %388 = vmatpush2.bf16.xpose.msra.mxu0 0
        %389 = vmatprep.subr.bf16.mxu0 0
        %390 = vmatpush2.bf16.xpose.msra.mxu0 0
        %391 = vmatprep.subr.bf16.mxu0 0
        %392 = vmatpush2.bf16.xpose.msra.mxu0 0
        %393 = vmatprep.mubr.bf16.mxu0 0
        %394 = vmatmul.mubr.bf16.gmra.mxu0 %v353
        %v395 = vpop.f32.mrf.mxu0
        %v396 = vadd.f32 0.0, %v395
        %v397 = vpop.f32.mrf.mxu0
        %v398 = vpop.f32.mrf.mxu0
        %v399 = vadd.f32 0.0, %v398
        %v400 = vpop.f32.mrf.mxu0
        %401 = vmatprep.mubr.bf16.mxu0 0
        %402 = vmatmul.mubr.bf16.gmra.mxu0 %v356
        %v403 = vpop.f32.mrf.mxu0
        %v404 = vadd.f32 0.0, %v403
        %v405 = vpop.f32.mrf.mxu0
        %v406 = vpop.f32.mrf.mxu0
        %v407 = vadd.f32 0.0, %v406
        %v408 = vpop.f32.mrf.mxu0
        %409 = vdwg.mxu0
        %v410 = vld [vmem:[%s330] sm:$0xf]
        %v411 = vld [vmem:[%s4] sm:$0xf]
        %v412 = vld [vmem:[%s4 + $0x4] sm:$0xf]
        %v413 = vld [vmem:[%s4 + $0x8] sm:$0xf]
        %v414 = vld [vmem:[%s4 + $0xc] sm:$0xf]
        %v419 = vunpack.c.l.b16 %v411
        %v420 = vunpack.c.l.b16 %v412
        %v421 = vunpack.c.l.b16 %v413
        %v422 = vunpack.c.l.b16 %v414
        %v423 = vpack.c.b16 %v420, %v419
        %v424 = vpack.c.b16 %v422, %v421
        %v426 = vsel %vm351, %v410, 0
        %v429 = vsel %vm351, %v423, 0
        %v432 = vsel %vm351, %v424, 0
        %434 = vmatprep.subr.bf16.mxu0 0
        %435 = vmatpush1.bf16.xpose.msra.mxu0 0
        %436 = vmatprep.subr.bf16.mxu0 0
        %437 = vmatpush1.bf16.xpose.msra.mxu0 0
        %438 = vmatprep.subr.bf16.mxu0 0
        %439 = vmatpush1.bf16.xpose.msra.mxu0 0
        %440 = vmatprep.subr.bf16.mxu0 0
        %441 = vmatpush1.bf16.xpose.msra.mxu0 0
        %442 = vmatprep.subr.bf16.mxu0 0
        %443 = vmatpush1.bf16.xpose.msra.mxu0 0
        %444 = vmatprep.subr.bf16.mxu0 0
        %445 = vmatpush1.bf16.xpose.msra.mxu0 0
        %446 = vmatprep.subr.bf16.mxu0 0
        %447 = vmatpush1.bf16.xpose.msra.mxu0 %v432
        %448 = vmatprep.subr.bf16.mxu0 0
        %449 = vmatpush1.bf16.xpose.msra.mxu0 %v429
        %450 = vmatprep.subr.bf16.mxu0 0
        %451 = vmatpush2.bf16.xpose.msra.mxu0 0
        %452 = vmatprep.subr.bf16.mxu0 0
        %453 = vmatpush2.bf16.xpose.msra.mxu0 0
        %454 = vmatprep.subr.bf16.mxu0 0
        %455 = vmatpush2.bf16.xpose.msra.mxu0 0
        %456 = vmatprep.subr.bf16.mxu0 0
        %457 = vmatpush2.bf16.xpose.msra.mxu0 0
        %458 = vmatprep.subr.bf16.mxu0 0
        %459 = vmatpush2.bf16.xpose.msra.mxu0 0
        %460 = vmatprep.subr.bf16.mxu0 0
        %461 = vmatpush2.bf16.xpose.msra.mxu0 0
        %462 = vmatprep.subr.bf16.mxu0 0
        %463 = vmatpush2.bf16.xpose.msra.mxu0 0
        %464 = vmatprep.subr.bf16.mxu0 0
        %465 = vmatpush2.bf16.xpose.msra.mxu0 0
        %466 = vmatprep.mubr.bf16.mxu0 0
        %467 = vmatmul.mubr.bf16.gmra.mxu0 %v426
        %v468 = vpop.f32.mrf.mxu0
        %v469 = vadd.f32 0.0, %v468
        %v470 = vpop.f32.mrf.mxu0
        %v471 = vpop.f32.mrf.mxu0
        %v472 = vpop.f32.mrf.mxu0
        %473 = vdwg.mxu0
        %v474 = vld [vmem:[%s334] sm:$0xf]
        %v475 = vld [vmem:[%s5] sm:$0xf]
        %v476 = vld [vmem:[%s5 + $0x4] sm:$0xf]
        %v477 = vld [vmem:[%s5 + $0x8] sm:$0xf]
        %v478 = vld [vmem:[%s5 + $0xc] sm:$0xf]
        %v483 = vunpack.c.l.b16 %v475
        %v484 = vunpack.c.l.b16 %v476
        %v485 = vunpack.c.l.b16 %v477
        %v486 = vunpack.c.l.b16 %v478
        %v487 = vpack.c.b16 %v484, %v483
        %v488 = vpack.c.b16 %v486, %v485
        %v490 = vsel %vm351, %v474, 0
        %v493 = vsel %vm351, %v487, 0
        %v496 = vsel %vm351, %v488, 0
        %498 = vmatprep.subr.bf16.mxu0 0
        %499 = vmatpush1.bf16.xpose.msra.mxu0 0
        %500 = vmatprep.subr.bf16.mxu0 0
        %501 = vmatpush1.bf16.xpose.msra.mxu0 0
        %502 = vmatprep.subr.bf16.mxu0 0
        %503 = vmatpush1.bf16.xpose.msra.mxu0 0
        %504 = vmatprep.subr.bf16.mxu0 0
        %505 = vmatpush1.bf16.xpose.msra.mxu0 0
        %506 = vmatprep.subr.bf16.mxu0 0
        %507 = vmatpush1.bf16.xpose.msra.mxu0 0
        %508 = vmatprep.subr.bf16.mxu0 0
        %509 = vmatpush1.bf16.xpose.msra.mxu0 0
        %510 = vmatprep.subr.bf16.mxu0 0
        %511 = vmatpush1.bf16.xpose.msra.mxu0 %v496
        %512 = vmatprep.subr.bf16.mxu0 0
        %513 = vmatpush1.bf16.xpose.msra.mxu0 %v493
        %514 = vmatprep.subr.bf16.mxu0 0
        %515 = vmatpush2.bf16.xpose.msra.mxu0 0
        %516 = vmatprep.subr.bf16.mxu0 0
        %517 = vmatpush2.bf16.xpose.msra.mxu0 0
        %518 = vmatprep.subr.bf16.mxu0 0
        %519 = vmatpush2.bf16.xpose.msra.mxu0 0
        %520 = vmatprep.subr.bf16.mxu0 0
        %521 = vmatpush2.bf16.xpose.msra.mxu0 0
        %522 = vmatprep.subr.bf16.mxu0 0
        %523 = vmatpush2.bf16.xpose.msra.mxu0 0
        %524 = vmatprep.subr.bf16.mxu0 0
        %525 = vmatpush2.bf16.xpose.msra.mxu0 0
        %526 = vmatprep.subr.bf16.mxu0 0
        %527 = vmatpush2.bf16.xpose.msra.mxu0 0
        %528 = vmatprep.subr.bf16.mxu0 0
        %529 = vmatpush2.bf16.xpose.msra.mxu0 0
        %530 = vmatprep.mubr.bf16.mxu0 0
        %531 = vmatmul.mubr.bf16.gmra.mxu0 %v490
        %v532 = vpop.f32.mrf.mxu0
        %v533 = vadd.f32 0.0, %v532
        %v534 = vpop.f32.mrf.mxu0
        %v535 = vpop.f32.mrf.mxu0
        %v536 = vpop.f32.mrf.mxu0
        %537 = vdwg.mxu0
        %539 = vset.pattern.permute.xlu0 0
        %540 = vperm.xlu0 %539, %v396
        %v541 = vpop.permute.xlu0 %540
        %v543 = vlaneseq
        %v544 = vshrl.u32 %v543, 7
        %v545 = vsub.s32 0, %v544
        %v546 = vrot.slane %v469, %v545
        %v547 = vmul.f32 %v541, %v546
        %549 = vset.pattern.permute.xlu0 0
        %550 = vperm.xlu0 %549, %v399
        %v551 = vpop.permute.xlu0 %550
        %v553 = vmul.f32 %v551, %v546
        %555 = vrot.lane.b32.xlu0 %v553, 120
        %v556 = vpop.permute.xlu0 %555
        %v558 = vadd.f32 %v547, %v556
        %560 = vset.pattern.permute.xlu0 0
        %561 = vperm.xlu0 %560, %v404
        %v562 = vpop.permute.xlu0 %561
        %v564 = vmul.f32 %v562, %v546
        %566 = vrot.lane.b32.xlu0 %v564, 112
        %v567 = vpop.permute.xlu0 %566
        %v569 = vadd.f32 %v558, %v567
        %571 = vset.pattern.permute.xlu0 0
        %572 = vperm.xlu0 %571, %v407
        %v573 = vpop.permute.xlu0 %572
        %v575 = vmul.f32 %v573, %v546
        %577 = vrot.lane.b32.xlu0 %v575, 104
        %v578 = vpop.permute.xlu0 %577
        %v580 = vadd.f32 %v569, %v578
        %vm581 = vcmask 64512
        %v582 = vsel %vm581, %v580, -inf
        %583 = vmax.xlane.f32.xlu0 %v582
        %v584 = vpop.xlane.xlu0 %583
        %v585 = vsub.f32 %v580, %v584
        %v586 = vmul.f32 %v585, 1.442695
        %v587 = vpow.pop %v586
        %v588 = vsel %vm581, %v587, 0.0
        %589 = vadd.xlane.f32.xlu0 %v588
        %v590 = vpop.xlane.xlu0 %589
        %v591 = vrcp.pop %v590
        %v592 = vmul.f32 %v587, %v591
        %v593 = vlaneseq
        %v594 = vshrl.u32 %v593, 7
        %v595 = vsub.s32 0, %v594
        %v596 = vrot.slane %v533, %v595
        %v597 = vmul.f32 %v592, %v596
        %v598 = vsel %vm581, %v597, 0.0
        %599 = vadd.xlane.f32.xlu0 %v598
        %v600 = vpop.xlane.xlu0 %599
        %vm601 = vcmask 7168
        %602 = vst.msk [vmem:[#allocation2] sm:$0xff] %vm601, %v600
        %604 = vrot.lane.b32.xlu0 %v596, 120
        %v605 = vpop.permute.xlu0 %604
        %v607 = vmul.f32 %v592, %v605
        %v608 = vsel %vm581, %v607, 0.0
        %609 = vadd.xlane.f32.xlu0 %v608
        %v610 = vpop.xlane.xlu0 %609
        %vm611 = vcmask 15368
        %612 = vst.msk [vmem:[#allocation2] sm:$0xff] %vm611, %v610
        %613 = vrot.lane.b32.xlu0 %v596, 112
        %v614 = vpop.permute.xlu0 %613
        %v616 = vmul.f32 %v592, %v614
        %v617 = vsel %vm581, %v616, 0.0
        %618 = vadd.xlane.f32.xlu0 %v617
        %v619 = vpop.xlane.xlu0 %618
        %vm620 = vcmask 23568
        %621 = vst.msk [vmem:[#allocation2] sm:$0xff] %vm620, %v619
        %622 = vrot.lane.b32.xlu0 %v596, 104
        %v623 = vpop.permute.xlu0 %622
        %v625 = vmul.f32 %v592, %v623
        %v626 = vsel %vm581, %v625, 0.0
        %627 = vadd.xlane.f32.xlu0 %v626
        %v628 = vpop.xlane.xlu0 %627
        %vm629 = vcmask 31768
        %630 = vst.msk [vmem:[#allocation2] sm:$0xff] %vm629, %v628
        %631 = vset.pattern.permute.xlu0 1
        %632 = vperm.xlu0 %631, %v396
        %v633 = vpop.permute.xlu0 %632
        %v635 = vlaneseq
        %v636 = vshrl.u32 %v635, 7
        %v637 = vsub.s32 1, %v636
        %v638 = vrot.slane %v469, %v637
        %v639 = vmul.f32 %v633, %v638
        %640 = vset.pattern.permute.xlu0 1
        %641 = vperm.xlu0 %640, %v399
        %v642 = vpop.permute.xlu0 %641
        %v644 = vmul.f32 %v642, %v638
        %646 = vrot.lane.b32.xlu0 %v644, 120
        %v647 = vpop.permute.xlu0 %646
        %v649 = vadd.f32 %v639, %v647
        %650 = vset.pattern.permute.xlu0 1
        %651 = vperm.xlu0 %650, %v404
        %v652 = vpop.permute.xlu0 %651
        %v654 = vmul.f32 %v652, %v638
        %656 = vrot.lane.b32.xlu0 %v654, 112
        %v657 = vpop.permute.xlu0 %656
        %v659 = vadd.f32 %v649, %v657
        %660 = vset.pattern.permute.xlu0 1
        %661 = vperm.xlu0 %660, %v407
        %v662 = vpop.permute.xlu0 %661
        %v664 = vmul.f32 %v662, %v638
        %666 = vrot.lane.b32.xlu0 %v664, 104
        %v667 = vpop.permute.xlu0 %666
        %v669 = vadd.f32 %v659, %v667
        %v670 = vsel %vm581, %v669, -inf
        %671 = vmax.xlane.f32.xlu0 %v670
        %v672 = vpop.xlane.xlu0 %671
        %v673 = vsub.f32 %v669, %v672
        %v674 = vmul.f32 %v673, 1.442695
        %v675 = vpow.pop %v674
        %v676 = vsel %vm581, %v675, 0.0
        %677 = vadd.xlane.f32.xlu0 %v676
        %v678 = vpop.xlane.xlu0 %677
        %v679 = vrcp.pop %v678
        %v680 = vmul.f32 %v675, %v679
        %v681 = vlaneseq
        %v682 = vshrl.u32 %v681, 7
        %v683 = vsub.s32 1, %v682
        %v684 = vrot.slane %v533, %v683
        %v685 = vmul.f32 %v680, %v684
        %v686 = vsel %vm581, %v685, 0.0
        %687 = vadd.xlane.f32.xlu0 %v686
        %v688 = vpop.xlane.xlu0 %687
        %vm689 = vcmask 39968
        %690 = vst.msk [vmem:[#allocation2] sm:$0xff] %vm689, %v688
        %692 = vrot.lane.b32.xlu0 %v684, 120
        %v693 = vpop.permute.xlu0 %692
        %v695 = vmul.f32 %v680, %v693
        %v696 = vsel %vm581, %v695, 0.0
        %697 = vadd.xlane.f32.xlu0 %v696
        %v698 = vpop.xlane.xlu0 %697
        %vm699 = vcmask 48168
        %700 = vst.msk [vmem:[#allocation2] sm:$0xff] %vm699, %v698
        %701 = vrot.lane.b32.xlu0 %v684, 112
        %v702 = vpop.permute.xlu0 %701
        %v704 = vmul.f32 %v680, %v702
        %v705 = vsel %vm581, %v704, 0.0
        %706 = vadd.xlane.f32.xlu0 %v705
        %v707 = vpop.xlane.xlu0 %706
        %vm708 = vcmask 56368
        %709 = vst.msk [vmem:[#allocation2] sm:$0xff] %vm708, %v707
        %710 = vrot.lane.b32.xlu0 %v684, 104
        %v711 = vpop.permute.xlu0 %710
        %v713 = vmul.f32 %v680, %v711
        %v714 = vsel %vm581, %v713, 0.0
        %715 = vadd.xlane.f32.xlu0 %v714
        %v716 = vpop.xlane.xlu0 %715
        %vm717 = vcmask 64568
        %718 = vst.msk [vmem:[#allocation2] sm:$0xff] %vm717, %v716
        %719 = vset.pattern.permute.xlu0 2
        %720 = vperm.xlu0 %719, %v396
        %v721 = vpop.permute.xlu0 %720
        %v723 = vlaneseq
        %v724 = vshrl.u32 %v723, 7
        %v725 = vsub.s32 2, %v724
        %v726 = vrot.slane %v469, %v725
        %v727 = vmul.f32 %v721, %v726
        %728 = vset.pattern.permute.xlu0 2
        %729 = vperm.xlu0 %728, %v399
        %v730 = vpop.permute.xlu0 %729
        %v732 = vmul.f32 %v730, %v726
        %734 = vrot.lane.b32.xlu0 %v732, 120
        %v735 = vpop.permute.xlu0 %734
        %v737 = vadd.f32 %v727, %v735
        %738 = vset.pattern.permute.xlu0 2
        %739 = vperm.xlu0 %738, %v404
        %v740 = vpop.permute.xlu0 %739
        %v742 = vmul.f32 %v740, %v726
        %744 = vrot.lane.b32.xlu0 %v742, 112
        %v745 = vpop.permute.xlu0 %744
        %v747 = vadd.f32 %v737, %v745
        %748 = vset.pattern.permute.xlu0 2
        %749 = vperm.xlu0 %748, %v407
        %v750 = vpop.permute.xlu0 %749
        %v752 = vmul.f32 %v750, %v726
        %754 = vrot.lane.b32.xlu0 %v752, 104
        %v755 = vpop.permute.xlu0 %754
        %v757 = vadd.f32 %v747, %v755
        %v758 = vsel %vm581, %v757, -inf
        %759 = vmax.xlane.f32.xlu0 %v758
        %v760 = vpop.xlane.xlu0 %759
        %v761 = vsub.f32 %v757, %v760
        %v762 = vmul.f32 %v761, 1.442695
        %v763 = vpow.pop %v762
        %v764 = vsel %vm581, %v763, 0.0
        %765 = vadd.xlane.f32.xlu0 %v764
        %v766 = vpop.xlane.xlu0 %765
        %v767 = vrcp.pop %v766
        %v768 = vmul.f32 %v763, %v767
        %v769 = vlaneseq
        %v770 = vshrl.u32 %v769, 7
        %v771 = vsub.s32 2, %v770
        %v772 = vrot.slane %v533, %v771
        %v773 = vmul.f32 %v768, %v772
        %v774 = vsel %vm581, %v773, 0.0
        %775 = vadd.xlane.f32.xlu0 %v774
        %v776 = vpop.xlane.xlu0 %775
        %vm777 = vcmask 72768
        %778 = vst.msk [vmem:[#allocation2] sm:$0xff] %vm777, %v776
        %780 = vrot.lane.b32.xlu0 %v772, 120
        %v781 = vpop.permute.xlu0 %780
        %v783 = vmul.f32 %v768, %v781
        %v784 = vsel %vm581, %v783, 0.0
        %785 = vadd.xlane.f32.xlu0 %v784
        %v786 = vpop.xlane.xlu0 %785
        %vm787 = vcmask 80968
        %788 = vst.msk [vmem:[#allocation2] sm:$0xff] %vm787, %v786
        %789 = vrot.lane.b32.xlu0 %v772, 112
        %v790 = vpop.permute.xlu0 %789
        %v792 = vmul.f32 %v768, %v790
        %v793 = vsel %vm581, %v792, 0.0
        %794 = vadd.xlane.f32.xlu0 %v793
        %v795 = vpop.xlane.xlu0 %794
        %vm796 = vcmask 89168
        %797 = vst.msk [vmem:[#allocation2] sm:$0xff] %vm796, %v795
        %798 = vrot.lane.b32.xlu0 %v772, 104
        %v799 = vpop.permute.xlu0 %798
        %v801 = vmul.f32 %v768, %v799
        %v802 = vsel %vm581, %v801, 0.0
        %803 = vadd.xlane.f32.xlu0 %v802
        %v804 = vpop.xlane.xlu0 %803
        %vm805 = vcmask 97368
        %806 = vst.msk [vmem:[#allocation2] sm:$0xff] %vm805, %v804
        %807 = vset.pattern.permute.xlu0 3
        %808 = vperm.xlu0 %807, %v396
        %v809 = vpop.permute.xlu0 %808
        %v811 = vlaneseq
        %v812 = vshrl.u32 %v811, 7
        %v813 = vsub.s32 3, %v812
        %v814 = vrot.slane %v469, %v813
        %v815 = vmul.f32 %v809, %v814
        %816 = vset.pattern.permute.xlu0 3
        %817 = vperm.xlu0 %816, %v399
        %v818 = vpop.permute.xlu0 %817
        %v820 = vmul.f32 %v818, %v814
        %822 = vrot.lane.b32.xlu0 %v820, 120
        %v823 = vpop.permute.xlu0 %822
        %v825 = vadd.f32 %v815, %v823
        %826 = vset.pattern.permute.xlu0 3
        %827 = vperm.xlu0 %826, %v404
        %v828 = vpop.permute.xlu0 %827
        %v830 = vmul.f32 %v828, %v814
        %832 = vrot.lane.b32.xlu0 %v830, 112
        %v833 = vpop.permute.xlu0 %832
        %v835 = vadd.f32 %v825, %v833
        %836 = vset.pattern.permute.xlu0 3
        %837 = vperm.xlu0 %836, %v407
        %v838 = vpop.permute.xlu0 %837
        %v840 = vmul.f32 %v838, %v814
        %842 = vrot.lane.b32.xlu0 %v840, 104
        %v843 = vpop.permute.xlu0 %842
        %v845 = vadd.f32 %v835, %v843
        %v846 = vsel %vm581, %v845, -inf
        %847 = vmax.xlane.f32.xlu0 %v846
        %v848 = vpop.xlane.xlu0 %847
        %v849 = vsub.f32 %v845, %v848
        %v850 = vmul.f32 %v849, 1.442695
        %v851 = vpow.pop %v850
        %v852 = vsel %vm581, %v851, 0.0
        %853 = vadd.xlane.f32.xlu0 %v852
        %v854 = vpop.xlane.xlu0 %853
        %v855 = vrcp.pop %v854
        %v856 = vmul.f32 %v851, %v855
        %v857 = vlaneseq
        %v858 = vshrl.u32 %v857, 7
        %v859 = vsub.s32 3, %v858
        %v860 = vrot.slane %v533, %v859
        %v861 = vmul.f32 %v856, %v860
        %v862 = vsel %vm581, %v861, 0.0
        %863 = vadd.xlane.f32.xlu0 %v862
        %v864 = vpop.xlane.xlu0 %863
        %vm865 = vcmask 105568
        %866 = vst.msk [vmem:[#allocation2] sm:$0xff] %vm865, %v864
        %868 = vrot.lane.b32.xlu0 %v860, 120
        %v869 = vpop.permute.xlu0 %868
        %v871 = vmul.f32 %v856, %v869
        %v872 = vsel %vm581, %v871, 0.0
        %873 = vadd.xlane.f32.xlu0 %v872
        %v874 = vpop.xlane.xlu0 %873
        %vm875 = vcmask 113768
        %876 = vst.msk [vmem:[#allocation2] sm:$0xff] %vm875, %v874
        %877 = vrot.lane.b32.xlu0 %v860, 112
        %v878 = vpop.permute.xlu0 %877
        %v880 = vmul.f32 %v856, %v878
        %v881 = vsel %vm581, %v880, 0.0
        %882 = vadd.xlane.f32.xlu0 %v881
        %v883 = vpop.xlane.xlu0 %882
        %vm884 = vcmask 121968
        %885 = vst.msk [vmem:[#allocation2] sm:$0xff] %vm884, %v883
        %886 = vrot.lane.b32.xlu0 %v860, 104
        %v887 = vpop.permute.xlu0 %886
        %v889 = vmul.f32 %v856, %v887
        %v890 = vsel %vm581, %v889, 0.0
        %891 = vadd.xlane.f32.xlu0 %v890
        %v892 = vpop.xlane.xlu0 %891
        %vm893 = vcmask 130168
        %894 = vst.msk [vmem:[#allocation2] sm:$0xff] %vm893, %v892
        %895 = vset.pattern.permute.xlu0 4
        %896 = vperm.xlu0 %895, %v396
        %v897 = vpop.permute.xlu0 %896
        %v899 = vlaneseq
        %v900 = vshrl.u32 %v899, 7
        %v901 = vsub.s32 4, %v900
        %v902 = vrot.slane %v469, %v901
        %v903 = vmul.f32 %v897, %v902
        %904 = vset.pattern.permute.xlu0 4
        %905 = vperm.xlu0 %904, %v399
        %v906 = vpop.permute.xlu0 %905
        %v908 = vmul.f32 %v906, %v902
        %910 = vrot.lane.b32.xlu0 %v908, 120
        %v911 = vpop.permute.xlu0 %910
        %v913 = vadd.f32 %v903, %v911
        %914 = vset.pattern.permute.xlu0 4
        %915 = vperm.xlu0 %914, %v404
        %v916 = vpop.permute.xlu0 %915
        %v918 = vmul.f32 %v916, %v902
        %920 = vrot.lane.b32.xlu0 %v918, 112
        %v921 = vpop.permute.xlu0 %920
        %v923 = vadd.f32 %v913, %v921
        %924 = vset.pattern.permute.xlu0 4
        %925 = vperm.xlu0 %924, %v407
        %v926 = vpop.permute.xlu0 %925
        %v928 = vmul.f32 %v926, %v902
        %930 = vrot.lane.b32.xlu0 %v928, 104
        %v931 = vpop.permute.xlu0 %930
        %v933 = vadd.f32 %v923, %v931
        %v934 = vsel %vm581, %v933, -inf
        %935 = vmax.xlane.f32.xlu0 %v934
        %v936 = vpop.xlane.xlu0 %935
        %v937 = vsub.f32 %v933, %v936
        %v938 = vmul.f32 %v937, 1.442695
        %v939 = vpow.pop %v938
        %v940 = vsel %vm581, %v939, 0.0
        %941 = vadd.xlane.f32.xlu0 %v940
        %v942 = vpop.xlane.xlu0 %941
        %v943 = vrcp.pop %v942
        %v944 = vmul.f32 %v939, %v943
        %v945 = vlaneseq
        %v946 = vshrl.u32 %v945, 7
        %v947 = vsub.s32 4, %v946
        %v948 = vrot.slane %v533, %v947
        %v949 = vmul.f32 %v944, %v948
        %v950 = vsel %vm581, %v949, 0.0
        %951 = vadd.xlane.f32.xlu0 %v950
        %v952 = vpop.xlane.xlu0 %951
        %vm953 = vcmask 138368
        %954 = vst.msk [vmem:[#allocation2] sm:$0xff] %vm953, %v952
        %956 = vrot.lane.b32.xlu0 %v948, 120
        %v957 = vpop.permute.xlu0 %956
        %v959 = vmul.f32 %v944, %v957
        %v960 = vsel %vm581, %v959, 0.0
        %961 = vadd.xlane.f32.xlu0 %v960
        %v962 = vpop.xlane.xlu0 %961
        %vm963 = vcmask 146568
        %964 = vst.msk [vmem:[#allocation2] sm:$0xff] %vm963, %v962
        %965 = vrot.lane.b32.xlu0 %v948, 112
        %v966 = vpop.permute.xlu0 %965
        %v968 = vmul.f32 %v944, %v966
        %v969 = vsel %vm581, %v968, 0.0
        %970 = vadd.xlane.f32.xlu0 %v969
        %v971 = vpop.xlane.xlu0 %970
        %vm972 = vcmask 154768
        %973 = vst.msk [vmem:[#allocation2] sm:$0xff] %vm972, %v971
        %974 = vrot.lane.b32.xlu0 %v948, 104
        %v975 = vpop.permute.xlu0 %974
        %v977 = vmul.f32 %v944, %v975
        %v978 = vsel %vm581, %v977, 0.0
        %979 = vadd.xlane.f32.xlu0 %v978
        %v980 = vpop.xlane.xlu0 %979
        %vm981 = vcmask 162968
        %982 = vst.msk [vmem:[#allocation2] sm:$0xff] %vm981, %v980
        %983 = vset.pattern.permute.xlu0 5
        %984 = vperm.xlu0 %983, %v396
        %v985 = vpop.permute.xlu0 %984
        %v987 = vlaneseq
        %v988 = vshrl.u32 %v987, 7
        %v989 = vsub.s32 5, %v988
        %v990 = vrot.slane %v469, %v989
        %v991 = vmul.f32 %v985, %v990
        %992 = vset.pattern.permute.xlu0 5
        %993 = vperm.xlu0 %992, %v399
        %v994 = vpop.permute.xlu0 %993
        %v996 = vmul.f32 %v994, %v990
        %998 = vrot.lane.b32.xlu0 %v996, 120
        %v999 = vpop.permute.xlu0 %998
        %v1001 = vadd.f32 %v991, %v999
        %1002 = vset.pattern.permute.xlu0 5
        %1003 = vperm.xlu0 %1002, %v404
        %v1004 = vpop.permute.xlu0 %1003
        %v1006 = vmul.f32 %v1004, %v990
        %1008 = vrot.lane.b32.xlu0 %v1006, 112
        %v1009 = vpop.permute.xlu0 %1008
        %v1011 = vadd.f32 %v1001, %v1009
        %1012 = vset.pattern.permute.xlu0 5
        %1013 = vperm.xlu0 %1012, %v407
        %v1014 = vpop.permute.xlu0 %1013
        %v1016 = vmul.f32 %v1014, %v990
        %1018 = vrot.lane.b32.xlu0 %v1016, 104
        %v1019 = vpop.permute.xlu0 %1018
        %v1021 = vadd.f32 %v1011, %v1019
        %v1022 = vsel %vm581, %v1021, -inf
        %1023 = vmax.xlane.f32.xlu0 %v1022
        %v1024 = vpop.xlane.xlu0 %1023
        %v1025 = vsub.f32 %v1021, %v1024
        %v1026 = vmul.f32 %v1025, 1.442695
        %v1027 = vpow.pop %v1026
        %v1028 = vsel %vm581, %v1027, 0.0
        %1029 = vadd.xlane.f32.xlu0 %v1028
        %v1030 = vpop.xlane.xlu0 %1029
        %v1031 = vrcp.pop %v1030
        %v1032 = vmul.f32 %v1027, %v1031
        %v1033 = vlaneseq
        %v1034 = vshrl.u32 %v1033, 7
        %v1035 = vsub.s32 5, %v1034
        %v1036 = vrot.slane %v533, %v1035
        %v1037 = vmul.f32 %v1032, %v1036
        %v1038 = vsel %vm581, %v1037, 0.0
        %1039 = vadd.xlane.f32.xlu0 %v1038
        %v1040 = vpop.xlane.xlu0 %1039
        %vm1041 = vcmask 171168
        %1042 = vst.msk [vmem:[#allocation2] sm:$0xff] %vm1041, %v1040
        %1044 = vrot.lane.b32.xlu0 %v1036, 120
        %v1045 = vpop.permute.xlu0 %1044
        %v1047 = vmul.f32 %v1032, %v1045
        %v1048 = vsel %vm581, %v1047, 0.0
        %1049 = vadd.xlane.f32.xlu0 %v1048
        %v1050 = vpop.xlane.xlu0 %1049
        %vm1051 = vcmask 179368
        %1052 = vst.msk [vmem:[#allocation2] sm:$0xff] %vm1051, %v1050
        %1053 = vrot.lane.b32.xlu0 %v1036, 112
        %v1054 = vpop.permute.xlu0 %1053
        %v1056 = vmul.f32 %v1032, %v1054
        %v1057 = vsel %vm581, %v1056, 0.0
        %1058 = vadd.xlane.f32.xlu0 %v1057
        %v1059 = vpop.xlane.xlu0 %1058
        %vm1060 = vcmask 187568
        %1061 = vst.msk [vmem:[#allocation2] sm:$0xff] %vm1060, %v1059
        %1062 = vrot.lane.b32.xlu0 %v1036, 104
        %v1063 = vpop.permute.xlu0 %1062
        %v1065 = vmul.f32 %v1032, %v1063
        %v1066 = vsel %vm581, %v1065, 0.0
        %1067 = vadd.xlane.f32.xlu0 %v1066
        %v1068 = vpop.xlane.xlu0 %1067
        %vm1069 = vcmask 195768
        %1070 = vst.msk [vmem:[#allocation2] sm:$0xff] %vm1069, %v1068
        %1071 = vset.pattern.permute.xlu0 6
        %1072 = vperm.xlu0 %1071, %v396
        %v1073 = vpop.permute.xlu0 %1072
        %v1075 = vlaneseq
        %v1076 = vshrl.u32 %v1075, 7
        %v1077 = vsub.s32 6, %v1076
        %v1078 = vrot.slane %v469, %v1077
        %v1079 = vmul.f32 %v1073, %v1078
        %1080 = vset.pattern.permute.xlu0 6
        %1081 = vperm.xlu0 %1080, %v399
        %v1082 = vpop.permute.xlu0 %1081
        %v1084 = vmul.f32 %v1082, %v1078
        %1086 = vrot.lane.b32.xlu0 %v1084, 120
        %v1087 = vpop.permute.xlu0 %1086
        %v1089 = vadd.f32 %v1079, %v1087
        %1090 = vset.pattern.permute.xlu0 6
        %1091 = vperm.xlu0 %1090, %v404
        %v1092 = vpop.permute.xlu0 %1091
        %v1094 = vmul.f32 %v1092, %v1078
        %1096 = vrot.lane.b32.xlu0 %v1094, 112
        %v1097 = vpop.permute.xlu0 %1096
        %v1099 = vadd.f32 %v1089, %v1097
        %1100 = vset.pattern.permute.xlu0 6
        %1101 = vperm.xlu0 %1100, %v407
        %v1102 = vpop.permute.xlu0 %1101
        %v1104 = vmul.f32 %v1102, %v1078
        %1106 = vrot.lane.b32.xlu0 %v1104, 104
        %v1107 = vpop.permute.xlu0 %1106
        %v1109 = vadd.f32 %v1099, %v1107
        %v1110 = vsel %vm581, %v1109, -inf
        %1111 = vmax.xlane.f32.xlu0 %v1110
        %v1112 = vpop.xlane.xlu0 %1111
        %v1113 = vsub.f32 %v1109, %v1112
        %v1114 = vmul.f32 %v1113, 1.442695
        %v1115 = vpow.pop %v1114
        %v1116 = vsel %vm581, %v1115, 0.0
        %1117 = vadd.xlane.f32.xlu0 %v1116
        %v1118 = vpop.xlane.xlu0 %1117
        %v1119 = vrcp.pop %v1118
        %v1120 = vmul.f32 %v1115, %v1119
        %v1121 = vlaneseq
        %v1122 = vshrl.u32 %v1121, 7
        %v1123 = vsub.s32 6, %v1122
        %v1124 = vrot.slane %v533, %v1123
        %v1125 = vmul.f32 %v1120, %v1124
        %v1126 = vsel %vm581, %v1125, 0.0
        %1127 = vadd.xlane.f32.xlu0 %v1126
        %v1128 = vpop.xlane.xlu0 %1127
        %vm1129 = vcmask 203968
        %1130 = vst.msk [vmem:[#allocation2] sm:$0xff] %vm1129, %v1128
        %1132 = vrot.lane.b32.xlu0 %v1124, 120
        %v1133 = vpop.permute.xlu0 %1132
        %v1135 = vmul.f32 %v1120, %v1133
        %v1136 = vsel %vm581, %v1135, 0.0
        %1137 = vadd.xlane.f32.xlu0 %v1136
        %v1138 = vpop.xlane.xlu0 %1137
        %vm1139 = vcmask 212168
        %1140 = vst.msk [vmem:[#allocation2] sm:$0xff] %vm1139, %v1138
        %1141 = vrot.lane.b32.xlu0 %v1124, 112
        %v1142 = vpop.permute.xlu0 %1141
        %v1144 = vmul.f32 %v1120, %v1142
        %v1145 = vsel %vm581, %v1144, 0.0
        %1146 = vadd.xlane.f32.xlu0 %v1145
        %v1147 = vpop.xlane.xlu0 %1146
        %vm1148 = vcmask 220368
        %1149 = vst.msk [vmem:[#allocation2] sm:$0xff] %vm1148, %v1147
        %1150 = vrot.lane.b32.xlu0 %v1124, 104
        %v1151 = vpop.permute.xlu0 %1150
        %v1153 = vmul.f32 %v1120, %v1151
        %v1154 = vsel %vm581, %v1153, 0.0
        %1155 = vadd.xlane.f32.xlu0 %v1154
        %v1156 = vpop.xlane.xlu0 %1155
        %vm1157 = vcmask 228568
        %1158 = vst.msk [vmem:[#allocation2] sm:$0xff] %vm1157, %v1156
        %1159 = vset.pattern.permute.xlu0 7
        %1160 = vperm.xlu0 %1159, %v396
        %v1161 = vpop.permute.xlu0 %1160
        %v1163 = vlaneseq
        %v1164 = vshrl.u32 %v1163, 7
        %v1165 = vsub.s32 7, %v1164
        %v1166 = vrot.slane %v469, %v1165
        %v1167 = vmul.f32 %v1161, %v1166
        %1168 = vset.pattern.permute.xlu0 7
        %1169 = vperm.xlu0 %1168, %v399
        %v1170 = vpop.permute.xlu0 %1169
        %v1172 = vmul.f32 %v1170, %v1166
        %1174 = vrot.lane.b32.xlu0 %v1172, 120
        %v1175 = vpop.permute.xlu0 %1174
        %v1177 = vadd.f32 %v1167, %v1175
        %1178 = vset.pattern.permute.xlu0 7
        %1179 = vperm.xlu0 %1178, %v404
        %v1180 = vpop.permute.xlu0 %1179
        %v1182 = vmul.f32 %v1180, %v1166
        %1184 = vrot.lane.b32.xlu0 %v1182, 112
        %v1185 = vpop.permute.xlu0 %1184
        %v1187 = vadd.f32 %v1177, %v1185
        %1188 = vset.pattern.permute.xlu0 7
        %1189 = vperm.xlu0 %1188, %v407
        %v1190 = vpop.permute.xlu0 %1189
        %v1192 = vmul.f32 %v1190, %v1166
        %1194 = vrot.lane.b32.xlu0 %v1192, 104
        %v1195 = vpop.permute.xlu0 %1194
        %v1197 = vadd.f32 %v1187, %v1195
        %v1198 = vsel %vm581, %v1197, -inf
        %1199 = vmax.xlane.f32.xlu0 %v1198
        %v1200 = vpop.xlane.xlu0 %1199
        %v1201 = vsub.f32 %v1197, %v1200
        %v1202 = vmul.f32 %v1201, 1.442695
        %v1203 = vpow.pop %v1202
        %v1204 = vsel %vm581, %v1203, 0.0
        %1205 = vadd.xlane.f32.xlu0 %v1204
        %v1206 = vpop.xlane.xlu0 %1205
        %v1207 = vrcp.pop %v1206
        %v1208 = vmul.f32 %v1203, %v1207
        %v1209 = vlaneseq
        %v1210 = vshrl.u32 %v1209, 7
        %v1211 = vsub.s32 7, %v1210
        %v1212 = vrot.slane %v533, %v1211
        %v1213 = vmul.f32 %v1208, %v1212
        %v1214 = vsel %vm581, %v1213, 0.0
        %1215 = vadd.xlane.f32.xlu0 %v1214
        %v1216 = vpop.xlane.xlu0 %1215
        %vm1217 = vcmask 236768
        %1218 = vst.msk [vmem:[#allocation2] sm:$0xff] %vm1217, %v1216
        %1220 = vrot.lane.b32.xlu0 %v1212, 120
        %v1221 = vpop.permute.xlu0 %1220
        %v1223 = vmul.f32 %v1208, %v1221
        %v1224 = vsel %vm581, %v1223, 0.0
        %1225 = vadd.xlane.f32.xlu0 %v1224
        %v1226 = vpop.xlane.xlu0 %1225
        %vm1227 = vcmask 244968
        %1228 = vst.msk [vmem:[#allocation2] sm:$0xff] %vm1227, %v1226
        %1229 = vrot.lane.b32.xlu0 %v1212, 112
        %v1230 = vpop.permute.xlu0 %1229
        %v1232 = vmul.f32 %v1208, %v1230
        %v1233 = vsel %vm581, %v1232, 0.0
        %1234 = vadd.xlane.f32.xlu0 %v1233
        %v1235 = vpop.xlane.xlu0 %1234
        %vm1236 = vcmask 253168
        %1237 = vst.msk [vmem:[#allocation2] sm:$0xff] %vm1236, %v1235
        %1238 = vrot.lane.b32.xlu0 %v1212, 104
        %v1239 = vpop.permute.xlu0 %1238
        %v1241 = vmul.f32 %v1208, %v1239
        %v1242 = vsel %vm581, %v1241, 0.0
        %1243 = vadd.xlane.f32.xlu0 %v1242
        %v1244 = vpop.xlane.xlu0 %1243
        %vm1245 = vcmask 261368
        %1246 = vst.msk [vmem:[#allocation2] sm:$0xff] %vm1245, %v1244
        %v1247 = vld [vmem:[#allocation2] sm:$0xff]
        %v1248 = vpack.c.bf16 %v1247, %v1247
        %v1249 = vld [vmem:[%s6] sm:$0xf]
        %v1250 = vld [vmem:[%s6 + $0x4] sm:$0xf]
        %v1251 = vld [vmem:[%s6 + $0x8] sm:$0xf]
        %v1252 = vld [vmem:[%s6 + $0xc] sm:$0xf]
        %v1253 = vld [vmem:[%s7] sm:$0x1]
        %v1255 = vlaneseq
        %v1256 = vshrl.u32 %v1255, 7
        %v1257 = vsub.s32 0, %v1256
        %v1258 = vrot.slane %v1253, %v1257
        %v1264 = vunpack.c.l.b16 %v1249
        %v1265 = vunpack.c.l.b16 %v1250
        %v1266 = vunpack.c.l.b16 %v1251
        %v1267 = vunpack.c.l.b16 %v1252
        %v1268 = vpack.c.b16 %v1265, %v1264
        %v1269 = vpack.c.b16 %v1267, %v1266
        %v1271 = vsel %vm351, %v1248, 0
        %v1274 = vsel %vm351, %v1268, 0
        %v1277 = vsel %vm351, %v1269, 0
        %1279 = vmatprep.subr.bf16.mxu0 0
        %1280 = vmatpush1.bf16.xpose.msra.mxu0 0
        %1281 = vmatprep.subr.bf16.mxu0 0
        %1282 = vmatpush1.bf16.xpose.msra.mxu0 0
        %1283 = vmatprep.subr.bf16.mxu0 0
        %1284 = vmatpush1.bf16.xpose.msra.mxu0 0
        %1285 = vmatprep.subr.bf16.mxu0 0
        %1286 = vmatpush1.bf16.xpose.msra.mxu0 0
        %1287 = vmatprep.subr.bf16.mxu0 0
        %1288 = vmatpush1.bf16.xpose.msra.mxu0 0
        %1289 = vmatprep.subr.bf16.mxu0 0
        %1290 = vmatpush1.bf16.xpose.msra.mxu0 0
        %1291 = vmatprep.subr.bf16.mxu0 0
        %1292 = vmatpush1.bf16.xpose.msra.mxu0 %v1277
        %1293 = vmatprep.subr.bf16.mxu0 0
        %1294 = vmatpush1.bf16.xpose.msra.mxu0 %v1274
        %1295 = vmatprep.subr.bf16.mxu0 0
        %1296 = vmatpush2.bf16.xpose.msra.mxu0 0
        %1297 = vmatprep.subr.bf16.mxu0 0
        %1298 = vmatpush2.bf16.xpose.msra.mxu0 0
        %1299 = vmatprep.subr.bf16.mxu0 0
        %1300 = vmatpush2.bf16.xpose.msra.mxu0 0
        %1301 = vmatprep.subr.bf16.mxu0 0
        %1302 = vmatpush2.bf16.xpose.msra.mxu0 0
        %1303 = vmatprep.subr.bf16.mxu0 0
        %1304 = vmatpush2.bf16.xpose.msra.mxu0 0
        %1305 = vmatprep.subr.bf16.mxu0 0
        %1306 = vmatpush2.bf16.xpose.msra.mxu0 0
        %1307 = vmatprep.subr.bf16.mxu0 0
        %1308 = vmatpush2.bf16.xpose.msra.mxu0 0
        %1309 = vmatprep.subr.bf16.mxu0 0
        %1310 = vmatpush2.bf16.xpose.msra.mxu0 0
        %1311 = vmatprep.mubr.bf16.mxu0 0
        %1312 = vmatmul.mubr.bf16.gmra.mxu0 %v1271
        %v1313 = vpop.f32.mrf.mxu0
        %v1314 = vadd.f32 %v1258, %v1313
        %v1315 = vpop.f32.mrf.mxu0
        %v1316 = vpop.f32.mrf.mxu0
        %v1317 = vpop.f32.mrf.mxu0
        %1318 = vdwg.mxu0
        %1319 = vst.msk [vmem:[%s322] sm:$0xff] %vm351, %v1314
        %s1320 = sand.u32 %s213, 1
        %s1321 = scalar_lea.sflag [#allocation4], %s1320
        %s1322 = sand.u32 %s213, 1
        %s1323 = smul.addr %s1322, 8
        %s1324 = scalar_lea.vmem [#allocation3], %s1323
        // Predicated region
        $region53: #{_mha_forward.1} parent=51 // pred_check
          %p1325 = pneg %p223
        $region54: #{_mha_forward.1} parent=51 // pred_check_branch
          %1327 = sbr.rel (%p1325) target = $region56
        $region55: #{_mha_forward.1} parent=51 // pred_region
          %s1329 = ssub.s32 128, 128
          %1330 = vsyncadd %s1321, %s1329
          %s1331 = smul.addr %s22, 128
          %s1332 = scalar_lea.hbm %s8, %s1331
          %s1334 = sshll.u32 %s1324, 4
          %s1335 = int_to_ptr.vmem [resolvable:$true] %s1334
          %1337 = dma.vmem_to_hbm [thread:$0]  %s1335, 128, %s1332, %s1321
        $region56: #{_mha_forward.1} parent=51 // pred_fallthru
          _
      $region52: #{_mha_forward.1} parent=5 // pred_fallthru
        _
      %p1338 = scmp.le.s32.totalorder 2, %s17
      // Predicated region
      $region57: #{_mha_forward.1} parent=5 // pred_check
        %p1339 = pneg %p1338
      $region58: #{_mha_forward.1} parent=5 // pred_check_branch
        %1341 = sbr.rel (%p1339) target = $region60
      $region59: #{_mha_forward.1} parent=5 // pred_region
        %s1342 = ssub.s32 %s17, 2
        // Predicated region
        $region61: #{_mha_forward.1} parent=59 // pred_check
          %p1343 = pneg %p229
        $region62: #{_mha_forward.1} parent=59 // pred_check_branch
          %1345 = sbr.rel (%p1343) target = $region64
        $region63: #{_mha_forward.1} parent=59 // pred_region
          %s1346 = sand.u32 %s214, 1
          %s1347 = scalar_lea.sflag [#allocation4], %s1346
          %s1348 = sand.u32 %s214, 1
          %s1349 = smul.addr %s1348, 8
          %s1350 = scalar_lea.vmem [#allocation3], %s1349
          %1351 = dma.done %s1347, 128
        $region64: #{_mha_forward.1} parent=59 // pred_fallthru
          _
      $region60: #{_mha_forward.1} parent=5 // pred_fallthru
        _
    $region6: #{_mha_forward.1} parent=1 // loop_footer
      %s21 = sadd.s32 1, %s17
    $region7: #{_mha_forward.1} parent=1 // loop_footer_branch
      %16 = sbr.rel target = $region3
    $region8: #{_mha_forward.1} parent=1 // loop_exit
      _
    %1352 = vsyncpa [#allocation4], 1
    %s1353 = scalar_lea.sflag [#allocation4], 1
    %1354 = vsyncpa %s1353, 1

</llo_original>
